<compile_context>
chip_gen: v6e
topology: v6e:2x2x1
jax: 0.10.0
libtpu: 0.0.40
codegen_flags: <defaults>
</compile_context>

<pallas_src>
import functools

import jax
import jax.numpy as jnp
from jax.experimental import pallas as pl
from jax.experimental.pallas import tpu as pltpu


def _round_up(x, m):
    return (x + m - 1) // m * m


# ---------------------------------------------------------------------------
# Kernels
# ---------------------------------------------------------------------------
def _conv_stats_kernel(p_ref, w_ref, y_ref, sum_ref, ssq_ref):
    """One im2col matmul tile (bf16 operands, f32 accumulation) + partial stats.

    p_ref: (tm, kpad) bf16, w_ref: (kpad, tn) bf16,
    y_ref: (tm, tn) bf16, sum_ref/ssq_ref: (1, 1, tn) f32.
    Conv bias is intentionally NOT added here: train-mode BN cancels it.
    Padded patch rows are exactly zero, so no row masking is needed for the
    statistics.
    """
    y = jnp.dot(p_ref[...], w_ref[...], preferred_element_type=jnp.float32)
    sum_ref[...] = jnp.sum(y, axis=0, keepdims=True)[None]
    ssq_ref[...] = jnp.sum(y * y, axis=0, keepdims=True)[None]
    y_ref[...] = y.astype(y_ref.dtype)          # bf16 store halves y traffic


def _conv_bias_kernel(p_ref, w_ref, b_ref, o_ref, *, has_relu):
    """Conv (im2col matmul) + bias (+ optional ReLU) when there is no BN."""
    y = jnp.dot(p_ref[...], w_ref[...], preferred_element_type=jnp.float32)
    y = y + b_ref[...]
    if has_relu:
        y = jnp.maximum(y, 0.0)
    o_ref[...] = y.astype(o_ref.dtype)


def _bn_relu_kernel(y_ref, scale_ref, shift_ref, o_ref, *, has_relu):
    """Apply precomputed per-channel scale/shift (+ReLU). Pure streaming."""
    y = y_ref[...].astype(jnp.float32) * scale_ref[...] + shift_ref[...]
    if has_relu:
        y = jnp.maximum(y, 0.0)
    o_ref[...] = y.astype(o_ref.dtype)


# ---------------------------------------------------------------------------
# Wrapper
# ---------------------------------------------------------------------------
@functools.partial(
    jax.jit,
    static_argnames=("stride", "padding", "has_bn", "has_relu", "eps"))
def conv_bn_relu_forward(x, weight, bias, gamma, beta, *,
                         stride=1, padding=1, has_bn=True, has_relu=True,
                         eps=1e-5):
    """x: NCHW, weight: [Cout, Cin, KH, KW] (PyTorch layouts). Returns NCHW."""
    n, cin, h, w_sp = x.shape
    cout, _, kh, kw = weight.shape
    hout = (h + 2 * padding - kh) // stride + 1
    wout = (w_sp + 2 * padding - kw) // stride + 1
    m = n * hout * wout
    k = kh * kw * cin

    kpad = _round_up(k, 128)               # lane-dense contraction depth
    cpad = _round_up(cout, 128)            # lane-dense output channels
    tn = 256 if cpad % 256 == 0 else 128   # 256-wide N for v6e/v7x MXU
    # Big M-tiles (HBM roofline) but keep >= 2 tiles so both v7x TCs get work.
    tm = max(8, min(512, _round_up(-(-m // 2), 8)))
    m_pad = _round_up(m, tm)
    grid_m = m_pad // tm
    grid_n = cpad // tn

    # ---- wrapper-side layout plumbing (fused into this jit) ----------------
    # bf16 patches: MXU-native operands and half the materialized im2col bytes.
    x_nhwc = jnp.transpose(x, (0, 2, 3, 1)).astype(jnp.bfloat16)
    xp = jnp.pad(x_nhwc,
                 ((0, 0), (padding, padding), (padding, padding), (0, 0)))
    cols = [xp[:,
               i:i + (hout - 1) * stride + 1:stride,
               j:j + (wout - 1) * stride + 1:stride, :]
            for i in range(kh) for j in range(kw)]
    if kpad > k:                           # fold K zero-pad into the concat
        cols.append(jnp.zeros((n, hout, wout, kpad - k), jnp.bfloat16))
    patches = jnp.concatenate(cols, axis=-1).reshape(m, kpad)
    if m_pad > m:
        patches = jnp.concatenate(
            [patches, jnp.zeros((m_pad - m, kpad), jnp.bfloat16)], axis=0)

    w_mat = jnp.transpose(weight, (2, 3, 1, 0)).reshape(k, cout)
    w_mat = jnp.pad(w_mat, ((0, kpad - k), (0, cpad - cout))).astype(jnp.bfloat16)
    g_p = jnp.pad(gamma.astype(jnp.float32).reshape(1, cout),
                  ((0, 0), (0, cpad - cout)))
    be_p = jnp.pad(beta.astype(jnp.float32).reshape(1, cout),
                   ((0, 0), (0, cpad - cout)))

    # VMEM budget: double-buffered bf16 patch/weight/y tiles + f32 working set.
    need = (2 * tm * kpad * 2 + 2 * kpad * tn * 2
            + 2 * tm * tn * (2 + 4) + 16 * cpad * 4)
    vmem_limit = int(min(64 * 1024 * 1024, max(32 * 1024 * 1024, 2 * need)))
    cparams = pltpu.CompilerParams(
        dimension_semantics=("parallel", "parallel"),
        vmem_limit_bytes=vmem_limit)

    conv_cost = pl.CostEstimate(
        flops=2 * m_pad * kpad * cpad,
        transcendentals=0,
        bytes_accessed=2 * (m_pad * kpad + kpad * cpad + m_pad * cpad))

    if has_bn:
        # Pass 1: conv matmul + per-tile partial stats (parallel over M,N tiles).
        y, sums, ssqs = pl.pallas_call(
            _conv_stats_kernel,
            out_shape=(jax.ShapeDtypeStruct((m_pad, cpad), jnp.bfloat16),
                       jax.ShapeDtypeStruct((grid_m, 1, cpad), jnp.float32),
                       jax.ShapeDtypeStruct((grid_m, 1, cpad), jnp.float32)),
            grid=(grid_m, grid_n),
            in_specs=[pl.BlockSpec((tm, kpad), lambda i, j: (i, 0)),
                      pl.BlockSpec((kpad, tn), lambda i, j: (0, j))],
            out_specs=(pl.BlockSpec((tm, tn), lambda i, j: (i, j)),
                       pl.BlockSpec((1, 1, tn), lambda i, j: (i, 0, j)),
                       pl.BlockSpec((1, 1, tn), lambda i, j: (i, 0, j))),
            compiler_params=cparams,
            cost_estimate=conv_cost,
        )(patches, w_mat)

        # Tiny cross-tile combine -> exact global batch stats and hoisted
        # per-channel scale/shift (rsqrt done once here, not per tile).
        total_sum = jnp.sum(sums, axis=0)[0]                  # (cpad,)
        total_ssq = jnp.sum(ssqs, axis=0)[0]                  # (cpad,)
        mean = total_sum / m
        var = jnp.maximum(total_ssq / m - mean * mean, 0.0)   # biased variance
        scale_c = g_p[0] * jax.lax.rsqrt(var + eps)
        shift_c = be_p[0] - mean * scale_c
        scale2 = scale_c.reshape(1, cpad)
        shift2 = shift_c.reshape(1, cpad)

        # Pass 2: y*scale + shift (+ReLU), streaming, in-place over y.
        bn_cost = pl.CostEstimate(
            flops=3 * m_pad * cpad,
            transcendentals=0,
            bytes_accessed=2 * 2 * m_pad * cpad + 8 * cpad)
        out_flat = pl.pallas_call(
            functools.partial(_bn_relu_kernel, has_relu=has_relu),
            out_shape=jax.ShapeDtypeStruct((m_pad, cpad), jnp.bfloat16),
            grid=(grid_m, grid_n),
            in_specs=[pl.BlockSpec((tm, tn), lambda i, j: (i, j)),
                      pl.BlockSpec((1, tn), lambda i, j: (0, j)),
                      pl.BlockSpec((1, tn), lambda i, j: (0, j))],
            out_specs=pl.BlockSpec((tm, tn), lambda i, j: (i, j)),
            input_output_aliases={0: 0},
            compiler_params=cparams,
            cost_estimate=bn_cost,
        )(y, scale2, shift2)
    else:
        b_p = jnp.pad(bias.astype(jnp.float32).reshape(1, cout),
                      ((0, 0), (0, cpad - cout)))
        out_flat = pl.pallas_call(
            functools.partial(_conv_bias_kernel, has_relu=has_relu),
            out_shape=jax.ShapeDtypeStruct((m_pad, cpad), x.dtype),
            grid=(grid_m, grid_n),
            in_specs=[pl.BlockSpec((tm, kpad), lambda i, j: (i, 0)),
                      pl.BlockSpec((kpad, tn), lambda i, j: (0, j)),
                      pl.BlockSpec((1, tn), lambda i, j: (0, j))],
            out_specs=pl.BlockSpec((tm, tn), lambda i, j: (i, j)),
            compiler_params=cparams,
            cost_estimate=conv_cost,
        )(patches, w_mat, b_p)

    # Strip padding, reassemble NCHW in the wrapper (kernel stores stay
    # lane-dense).
    out = out_flat[:m, :cout].reshape(n, hout, wout, cout)
    return jnp.transpose(out, (0, 3, 1, 2)).astype(x.dtype)


# ---------------------------------------------------------------------------
# Pure-JAX f32 reference (conv + train-mode BN + ReLU) for a sanity check.
# ---------------------------------------------------------------------------
def _reference(x, weight, bias, gamma, beta, *, stride, padding,
               has_bn=True, has_relu=True, eps=1e-5):
    y = jax.lax.conv_general_dilated(
        x, weight, window_strides=(stride, stride),
        padding=[(padding, padding), (padding, padding)],
        dimension_numbers=("NCHW", "OIHW", "NCHW"))
    y = y + bias[None, :, None, None]
    if has_bn:
        mean = jnp.mean(y, axis=(0, 2, 3), keepdims=True)
        var = jnp.mean((y - mean) ** 2, axis=(0, 2, 3), keepdims=True)
        y = (y - mean) * jax.lax.rsqrt(var + eps)
        y = y * gamma[None, :, None, None] + beta[None, :, None, None]
    if has_relu:
        y = jnp.maximum(y, 0.0)
    return y


if __name__ == "__main__":
    key = jax.random.PRNGKey(0)
    k_x, k_w, k_b, k_g, k_be = jax.random.split(key, 5)

    # Module config: conv_bn_relu(in_planes=4, out_planes=8, kernel_size=3,
    #                             stride=1, padding=1)
    N, CIN, H, W = 2, 4, 16, 16
    COUT, KH, KW = 8, 3, 3
    STRIDE, PAD = 1, 1

    x = jax.random.normal(k_x, (N, CIN, H, W), jnp.float32)
    weight = jax.random.normal(k_w, (COUT, CIN, KH, KW), jnp.float32) * 0.1
    bias = jax.random.normal(k_b, (COUT,), jnp.float32) * 0.1
    gamma = 1.0 + 0.1 * jax.random.normal(k_g, (COUT,), jnp.float32)
    beta = 0.1 * jax.random.normal(k_be, (COUT,), jnp.float32)

    # Tolerance: MXU operands and the y / output stores are bf16 (by design),
    # so compare against the f32 reference with a bf16-scale tolerance.
    ATOL = RTOL = 5e-2

    # conv + BN + ReLU path
    out = conv_bn_relu_forward(x, weight, bias, gamma, beta,
                               stride=STRIDE, padding=PAD,
                               has_bn=True, has_relu=True)
    out = jax.block_until_ready(out)
    ref = _reference(x, weight, bias, gamma, beta, stride=STRIDE, padding=PAD,
                     has_bn=True, has_relu=True)
    assert out.shape == ref.shape == (N, COUT, H, W)
    assert jnp.allclose(out, ref, atol=ATOL, rtol=RTOL), "mismatch (bn path)"

    # conv + bias + ReLU path (no BN)
    out2 = conv_bn_relu_forward(x, weight, bias, gamma, beta,
                                stride=STRIDE, padding=PAD,
                                has_bn=False, has_relu=True)
    out2 = jax.block_until_ready(out2)
    ref2 = _reference(x, weight, bias, gamma, beta, stride=STRIDE, padding=PAD,
                      has_bn=False, has_relu=True)
    assert jnp.allclose(out2, ref2, atol=ATOL, rtol=RTOL), "mismatch (no-bn)"

    print("KERNEL_OK")
</pallas_src>

<mosaic_0001>
module attributes {stable_mosaic.version = 11 : i64} {
  func.func @_bn_relu_kernel(%arg0: i32, %arg1: i32, %arg2: memref<256x128xbf16, #tpu.memory_space<vmem>>, %arg3: memref<1x128xf32, #tpu.memory_space<vmem>>, %arg4: memref<1x128xf32, #tpu.memory_space<vmem>>, %arg5: memref<256x128xbf16, #tpu.memory_space<vmem>>) attributes {dimension_semantics = [#tpu.dimension_semantics<parallel>, #tpu.dimension_semantics<parallel>], iteration_bounds = array<i64: 2, 1>, scalar_prefetch = 0 : i64, scratch_operands = 0 : i64, tpu.core_type = #tpu.core_type<tc>, window_params = [{transform_indices = @transform_0, window_bounds = array<i64: 256, 128>}, {transform_indices = @transform_1, window_bounds = array<i64: 1, 128>}, {transform_indices = @transform_2, window_bounds = array<i64: 1, 128>}, {transform_indices = @transform_3, window_bounds = array<i64: 256, 128>}]} {
    %c0 = arith.constant 0 : index
    %c0_0 = arith.constant 0 : index
    %0 = vector.load %arg2[%c0, %c0_0] : memref<256x128xbf16, #tpu.memory_space<vmem>>, vector<256x128xbf16>
    %1 = arith.extf %0 : vector<256x128xbf16> to vector<256x128xf32>
    %c0_1 = arith.constant 0 : index
    %c0_2 = arith.constant 0 : index
    %2 = vector.load %arg3[%c0_1, %c0_2] : memref<1x128xf32, #tpu.memory_space<vmem>>, vector<1x128xf32>
    %3 = vector.broadcast %2 : vector<1x128xf32> to vector<256x128xf32>
    %4 = arith.mulf %1, %3 : vector<256x128xf32>
    %c0_3 = arith.constant 0 : index
    %c0_4 = arith.constant 0 : index
    %5 = vector.load %arg4[%c0_3, %c0_4] : memref<1x128xf32, #tpu.memory_space<vmem>>, vector<1x128xf32>
    %6 = vector.broadcast %5 : vector<1x128xf32> to vector<256x128xf32>
    %7 = arith.addf %4, %6 : vector<256x128xf32>
    %cst = arith.constant 0.000000e+00 : f32
    %8 = vector.broadcast %cst : f32 to vector<256x128xf32>
    %9 = arith.maximumf %7, %8 : vector<256x128xf32>
    %10 = arith.truncf %9 : vector<256x128xf32> to vector<256x128xbf16>
    %c0_5 = arith.constant 0 : index
    %c0_6 = arith.constant 0 : index
    %11 = vector.load %arg5[%c0_5, %c0_6] : memref<256x128xbf16, #tpu.memory_space<vmem>>, vector<256x128xbf16>
    tpu.vector_store %arg5[%c0_5, %c0_6], %10 {strides = array<i32>} : memref<256x128xbf16, #tpu.memory_space<vmem>>, vector<256x128xbf16>,
    return
  }
  func.func @transform_0(%arg0: i32, %arg1: i32) -> (i32, i32) {
    %c0_i32 = arith.constant 0 : i32
    return %arg0, %arg1 : i32, i32
  }
  func.func @transform_1(%arg0: i32, %arg1: i32) -> (i32, i32) {
    %c0_i32 = arith.constant 0 : i32
    %c0_i32_0 = arith.constant 0 : i32
    return %c0_i32, %arg1 : i32, i32
  }
  func.func @transform_2(%arg0: i32, %arg1: i32) -> (i32, i32) {
    %c0_i32 = arith.constant 0 : i32
    %c0_i32_0 = arith.constant 0 : i32
    return %c0_i32, %arg1 : i32, i32
  }
  func.func @transform_3(%arg0: i32, %arg1: i32) -> (i32, i32) {
    %c0_i32 = arith.constant 0 : i32
    return %arg0, %arg1 : i32, i32
  }
}

module attributes {stable_mosaic.version = 11 : i64} {
  func.func @_conv_stats_kernel(%arg0: i32, %arg1: i32, %arg2: memref<256x128xbf16, #tpu.memory_space<vmem>>, %arg3: memref<128x128xbf16, #tpu.memory_space<vmem>>, %arg4: memref<256x128xbf16, #tpu.memory_space<vmem>>, %arg5: memref<1x1x128xf32, #tpu.memory_space<vmem>>, %arg6: memref<1x1x128xf32, #tpu.memory_space<vmem>>) attributes {dimension_semantics = [#tpu.dimension_semantics<parallel>, #tpu.dimension_semantics<parallel>], iteration_bounds = array<i64: 2, 1>, scalar_prefetch = 0 : i64, scratch_operands = 0 : i64, tpu.core_type = #tpu.core_type<tc>, window_params = [{transform_indices = @transform_0, window_bounds = array<i64: 256, 128>}, {transform_indices = @transform_1, window_bounds = array<i64: 128, 128>}, {transform_indices = @transform_2, window_bounds = array<i64: 256, 128>}, {transform_indices = @transform_3, window_bounds = array<i64: 1, 1, 128>}, {transform_indices = @transform_4, window_bounds = array<i64: 1, 1, 128>}]} {
    %c0 = arith.constant 0 : index
    %c0_0 = arith.constant 0 : index
    %0 = vector.load %arg2[%c0, %c0_0] : memref<256x128xbf16, #tpu.memory_space<vmem>>, vector<256x128xbf16>
    %c0_1 = arith.constant 0 : index
    %c0_2 = arith.constant 0 : index
    %1 = vector.load %arg3[%c0_1, %c0_2] : memref<128x128xbf16, #tpu.memory_space<vmem>>, vector<128x128xbf16>
    %cst = arith.constant dense<0.000000e+00> : vector<256x128xf32>
    %2 = tpu.matmul %0, %1, %cst {dimension_numbers = #tpu.dot_dimension_numbers<[1], [0], [0], [1], [0, 0, 1, 1], [], []>} : vector<256x128xbf16>, vector<128x128xbf16>, vector<256x128xf32> -> vector<256x128xf32>
    %cst_3 = arith.constant dense<0.000000e+00> : vector<128xf32>
    %3 = vector.multi_reduction <add>, %2, %cst_3 [0] : vector<256x128xf32> to vector<128xf32>
    %4 = vector.shape_cast %3 : vector<128xf32> to vector<1x128xf32>
    %5 = vector.shape_cast %4 : vector<1x128xf32> to vector<1x1x128xf32>
    %c0_4 = arith.constant 0 : index
    %c0_5 = arith.constant 0 : index
    %c0_6 = arith.constant 0 : index
    %6 = vector.load %arg5[%c0_4, %c0_5, %c0_6] : memref<1x1x128xf32, #tpu.memory_space<vmem>>, vector<1x1x128xf32>
    tpu.vector_store %arg5[%c0_4, %c0_5, %c0_6], %5 {strides = array<i32>} : memref<1x1x128xf32, #tpu.memory_space<vmem>>, vector<1x1x128xf32>,
    %7 = arith.mulf %2, %2 : vector<256x128xf32>
    %cst_7 = arith.constant dense<0.000000e+00> : vector<128xf32>
    %8 = vector.multi_reduction <add>, %7, %cst_7 [0] : vector<256x128xf32> to vector<128xf32>
    %9 = vector.shape_cast %8 : vector<128xf32> to vector<1x128xf32>
    %10 = vector.shape_cast %9 : vector<1x128xf32> to vector<1x1x128xf32>
    %c0_8 = arith.constant 0 : index
    %c0_9 = arith.constant 0 : index
    %c0_10 = arith.constant 0 : index
    %11 = vector.load %arg6[%c0_8, %c0_9, %c0_10] : memref<1x1x128xf32, #tpu.memory_space<vmem>>, vector<1x1x128xf32>
    tpu.vector_store %arg6[%c0_8, %c0_9, %c0_10], %10 {strides = array<i32>} : memref<1x1x128xf32, #tpu.memory_space<vmem>>, vector<1x1x128xf32>,
    %12 = arith.truncf %2 : vector<256x128xf32> to vector<256x128xbf16>
    %c0_11 = arith.constant 0 : index
    %c0_12 = arith.constant 0 : index
    %13 = vector.load %arg4[%c0_11, %c0_12] : memref<256x128xbf16, #tpu.memory_space<vmem>>, vector<256x128xbf16>
    tpu.vector_store %arg4[%c0_11, %c0_12], %12 {strides = array<i32>} : memref<256x128xbf16, #tpu.memory_space<vmem>>, vector<256x128xbf16>,
    return
  }
  func.func @transform_0(%arg0: i32, %arg1: i32) -> (i32, i32) {
    %c0_i32 = arith.constant 0 : i32
    %c0_i32_0 = arith.constant 0 : i32
    return %arg0, %c0_i32 : i32, i32
  }
  func.func @transform_1(%arg0: i32, %arg1: i32) -> (i32, i32) {
    %c0_i32 = arith.constant 0 : i32
    %c0_i32_0 = arith.constant 0 : i32
    return %c0_i32, %arg1 : i32, i32
  }
  func.func @transform_2(%arg0: i32, %arg1: i32) -> (i32, i32) {
    %c0_i32 = arith.constant 0 : i32
    return %arg0, %arg1 : i32, i32
  }
  func.func @transform_3(%arg0: i32, %arg1: i32) -> (i32, i32, i32) {
    %c0_i32 = arith.constant 0 : i32
    %c0_i32_0 = arith.constant 0 : i32
    return %arg0, %c0_i32, %arg1 : i32, i32, i32
  }
  func.func @transform_4(%arg0: i32, %arg1: i32) -> (i32, i32, i32) {
    %c0_i32 = arith.constant 0 : i32
    %c0_i32_0 = arith.constant 0 : i32
    return %arg0, %c0_i32, %arg1 : i32, i32, i32
  }
}

</mosaic_0001>

<llo_original>
// kernel: conv_bn_relu_forward.3
$region0: #{conv_bn_relu_forward.3}
  #allocation0 [shape = 'u32[]', space=smem, size = 0x4, offset = 0x4, fixed_abs, tag = 'smem constant byte address 0x4 - core index']
  #allocation1 [shape = 'u32[144,128]{1,0:T(1,128)}', space=vmem, size = 0x12000, scoped, tag = 'internal scratch']
  %s0 = inlined_call_operand.vmem [shape: bf16[512,128], index: 0, kind: input, shape index: {}, may-alias: {0,3}]
  %s1 = inlined_call_operand.vmem [shape: f32[1,128], index: 1, kind: input, shape index: {}]
  %s2 = inlined_call_operand.vmem [shape: f32[1,128], index: 2, kind: input, shape index: {}]
  %s3 = inlined_call_operand.vmem [shape: bf16[512,128], index: 3, kind: output, shape index: {}, may-alias: {0,3}]
  %s4 = sld [smem:[#allocation0]]
  $region45: #{conv_bn_relu_forward.3} parent=0
    _
  %s6 = ssub.s32 1, %s4
  %s7 = scalar_select 0, %s6, %s4
  loop: start=0, step=1, limit=4
  $region2: #{conv_bn_relu_forward.3} parent=0 // loop_pre_header
    _
  $region3: #{conv_bn_relu_forward.3} parent=0 // loop_header
    %s9 = sphi 0, %s13
    %p10 = scmp.ge.s32.totalorder %s9, 4
    %s16 = sphi 0, %s28
    %s17 = sphi 0, %s24
    %s18 = sphi 0, %s16
    %s19 = sphi 0, %s17
    %s20 = sphi 0, %s18
    %s21 = sphi 0, %s19
    %s33 = sphi 0, %s35
    %s36 = sphi 0, %s33
    %s37 = sphi 0, %s36
    %s53 = sphi 0, %s37
    %s59 = sphi 0, %s61
    %s62 = sphi 0, %s59
    %s63 = sphi 0, %s62
    %s79 = sphi 0, %s63
    %s85 = sphi 0, %s87
    %s88 = sphi 0, %s85
    %s89 = sphi 0, %s88
    %s105 = sphi 0, %s89
    %s113 = sphi 0, %s115
    %s116 = sphi 0, %s113
    %s117 = sphi 0, %s116
    %s133 = sphi 0, %s117
  $region4: #{conv_bn_relu_forward.3} parent=0 // loop_header_branch
    %12 = sbr.rel (%p10) target = $region8
  $region5: #{conv_bn_relu_forward.3} parent=0 // loop_body
    %s14 = ssub.s32 %s9, 1
    %s15 = ssub.s32 %s9, 2
    %s22 = sadd.s32 1, %s17
    %p23 = scmp.ge.s32.totalorder %s22, 1
    %s24 = scalar_select %p23, 0, %s22
    %s25 = sadd.s32 1, %s16
    %s26 = scalar_select %p23, %s25, %s16
    %p27 = scmp.ge.s32.totalorder %s26, 2
    %s28 = scalar_select %p27, 0, %s26
    %s29 = ssub.s32 %s16, %s28
    %s30 = ssub.s32 %s17, %s24
    %s31 = sor.u32 %s29, %s30
    %p32 = scmp.eq.s32.totalorder %s31, 0
    %s34 = sadd.s32 %s33, 1
    %s35 = scalar_select %p32, %s33, %s34
    %p38 = pneg %p32
    %p39 = scmp.eq.s32.totalorder %s9, 1
    %p40 = por %p38, %p39
    %p41 = scmp.ne.s32.totalorder %s33, %s36
    %p42 = scmp.eq.s32.totalorder %s9, 0
    %p43 = por %p41, %p42
    %p44 = scmp.ne.s32.totalorder %s33, %s36
    %p45 = scmp.eq.s32.totalorder %s14, 1
    %p46 = por %p44, %p45
    %p47 = scmp.ne.s32.totalorder %s36, %s37
    %p48 = scmp.eq.s32.totalorder %s14, 0
    %p49 = por %p47, %p48
    %p50 = scmp.ne.s32.totalorder %s36, %s37
    %p51 = scmp.eq.s32.totalorder %s15, 1
    %p52 = por %p50, %p51
    %p54 = scmp.ne.s32.totalorder %s37, %s53
    %p55 = scmp.eq.s32.totalorder %s15, 0
    %p56 = por %p54, %p55
    %s57 = ssub.s32 %s17, %s24
    %p58 = scmp.eq.s32.totalorder %s57, 0
    %s60 = sadd.s32 %s59, 1
    %s61 = scalar_select %p58, %s59, %s60
    %p64 = pneg %p58
    %p65 = scmp.eq.s32.totalorder %s9, 1
    %p66 = por %p64, %p65
    %p67 = scmp.ne.s32.totalorder %s59, %s62
    %p68 = scmp.eq.s32.totalorder %s9, 0
    %p69 = por %p67, %p68
    %p70 = scmp.ne.s32.totalorder %s59, %s62
    %p71 = scmp.eq.s32.totalorder %s14, 1
    %p72 = por %p70, %p71
    %p73 = scmp.ne.s32.totalorder %s62, %s63
    %p74 = scmp.eq.s32.totalorder %s14, 0
    %p75 = por %p73, %p74
    %p76 = scmp.ne.s32.totalorder %s62, %s63
    %p77 = scmp.eq.s32.totalorder %s15, 1
    %p78 = por %p76, %p77
    %p80 = scmp.ne.s32.totalorder %s63, %s79
    %p81 = scmp.eq.s32.totalorder %s15, 0
    %p82 = por %p80, %p81
    %s83 = ssub.s32 %s17, %s24
    %p84 = scmp.eq.s32.totalorder %s83, 0
    %s86 = sadd.s32 %s85, 1
    %s87 = scalar_select %p84, %s85, %s86
    %p90 = pneg %p84
    %p91 = scmp.eq.s32.totalorder %s9, 1
    %p92 = por %p90, %p91
    %p93 = scmp.ne.s32.totalorder %s85, %s88
    %p94 = scmp.eq.s32.totalorder %s9, 0
    %p95 = por %p93, %p94
    %p96 = scmp.ne.s32.totalorder %s85, %s88
    %p97 = scmp.eq.s32.totalorder %s14, 1
    %p98 = por %p96, %p97
    %p99 = scmp.ne.s32.totalorder %s88, %s89
    %p100 = scmp.eq.s32.totalorder %s14, 0
    %p101 = por %p99, %p100
    %p102 = scmp.ne.s32.totalorder %s88, %s89
    %p103 = scmp.eq.s32.totalorder %s15, 1
    %p104 = por %p102, %p103
    %p106 = scmp.ne.s32.totalorder %s89, %s105
    %p107 = scmp.eq.s32.totalorder %s15, 0
    %p108 = por %p106, %p107
    %s109 = ssub.s32 %s16, %s28
    %s110 = ssub.s32 %s17, %s24
    %s111 = sor.u32 %s109, %s110
    %p112 = scmp.eq.s32.totalorder %s111, 0
    %s114 = sadd.s32 %s113, 1
    %s115 = scalar_select %p112, %s113, %s114
    %p118 = pneg %p112
    %p119 = scmp.eq.s32.totalorder %s9, 1
    %p120 = por %p118, %p119
    %p121 = scmp.ne.s32.totalorder %s113, %s116
    %p122 = scmp.eq.s32.totalorder %s9, 0
    %p123 = por %p121, %p122
    %p124 = scmp.ne.s32.totalorder %s113, %s116
    %p125 = scmp.eq.s32.totalorder %s14, 1
    %p126 = por %p124, %p125
    %p127 = scmp.ne.s32.totalorder %s116, %s117
    %p128 = scmp.eq.s32.totalorder %s14, 0
    %p129 = por %p127, %p128
    %p130 = scmp.ne.s32.totalorder %s116, %s117
    %p131 = scmp.eq.s32.totalorder %s15, 1
    %p132 = por %p130, %p131
    %p134 = scmp.ne.s32.totalorder %s117, %s133
    %p135 = scmp.eq.s32.totalorder %s15, 0
    %p136 = por %p134, %p135
    %p137 = scmp.le.s32.totalorder 1, %s9
    %p138 = scmp.lt.s32.totalorder %s9, 3
    %p139 = pnand %p137, %p138
    %p140 = pneg %p139
    // Predicated region
    $region9: #{conv_bn_relu_forward.3} parent=5 // pred_check
      _
    $region10: #{conv_bn_relu_forward.3} parent=5 // pred_check_branch
      %142 = sbr.rel (%p139) target = $region12
    $region11: #{conv_bn_relu_forward.3} parent=5 // pred_region
      %s143 = ssub.s32 %s9, 1
      // Predicated region
      $region13: #{conv_bn_relu_forward.3} parent=11 // pred_check
        %p144 = pneg %p75
      $region14: #{conv_bn_relu_forward.3} parent=11 // pred_check_branch
        %146 = sbr.rel (%p144) target = $region16
      $region15: #{conv_bn_relu_forward.3} parent=11 // pred_region
        %p147 = scmp.lt.s32.totalorder %s19, 0
        %s148 = scalar_select %p147, %s19, 0
        %s149 = scalar_lea.vmem %s1, %s148
      $region16: #{conv_bn_relu_forward.3} parent=11 // pred_fallthru
        _
      // Predicated region
      $region17: #{conv_bn_relu_forward.3} parent=11 // pred_check
        %p150 = pneg %p101
      $region18: #{conv_bn_relu_forward.3} parent=11 // pred_check_branch
        %152 = sbr.rel (%p150) target = $region20
      $region19: #{conv_bn_relu_forward.3} parent=11 // pred_region
        %p153 = scmp.lt.s32.totalorder %s19, 0
        %s154 = scalar_select %p153, %s19, 0
        %s155 = scalar_lea.vmem %s2, %s154
      $region20: #{conv_bn_relu_forward.3} parent=11 // pred_fallthru
        _
    $region12: #{conv_bn_relu_forward.3} parent=5 // pred_fallthru
      _
    %p156 = scmp.lt.s32.totalorder %s9, 2
    // Predicated region
    $region21: #{conv_bn_relu_forward.3} parent=5 // pred_check
      %p157 = pneg %p156
    $region22: #{conv_bn_relu_forward.3} parent=5 // pred_check_branch
      %159 = sbr.rel (%p157) target = $region24
    $region23: #{conv_bn_relu_forward.3} parent=5 // pred_region
      // Predicated region
      $region25: #{conv_bn_relu_forward.3} parent=23 // pred_check
        %p160 = pneg %p43
      $region26: #{conv_bn_relu_forward.3} parent=23 // pred_check_branch
        %162 = sbr.rel (%p160) target = $region28
      $region27: #{conv_bn_relu_forward.3} parent=23 // pred_region
        %s163 = smul.u32 32, %s16
        %p164 = scmp.lt.s32.totalorder %s163, 63
        %s165 = scalar_select %p164, %s163, 63
        %p166 = scmp.lt.s32.totalorder %s17, 0
        %s167 = scalar_select %p166, %s17, 0
        %s168 = sadd.s32 %s167, %s165
        %s169 = smul.addr %s168, 4
        %s170 = scalar_lea.vmem %s0, %s169
        %s171 = smul.u32 32, %s16
      $region28: #{conv_bn_relu_forward.3} parent=23 // pred_fallthru
        _
    $region24: #{conv_bn_relu_forward.3} parent=5 // pred_fallthru
      _
    %p172 = scmp.le.s32.totalorder 1, %s9
    %p173 = scmp.lt.s32.totalorder %s9, 3
    %p174 = pnand %p172, %p173
    %p175 = pneg %p174
    // Predicated region
    $region29: #{conv_bn_relu_forward.3} parent=5 // pred_check
      _
    $region30: #{conv_bn_relu_forward.3} parent=5 // pred_check_branch
      %177 = sbr.rel (%p174) target = $region32
    $region31: #{conv_bn_relu_forward.3} parent=5 // pred_region
      %s178 = ssub.s32 %s9, 1
      %s179 = smul.u32 32, %s18
      %p180 = scmp.lt.s32.totalorder %s179, 63
      %s181 = scalar_select %p180, %s179, 63
      %p182 = scmp.lt.s32.totalorder %s19, 0
      %s183 = scalar_select %p182, %s19, 0
      %s184 = sadd.s32 %s183, %s181
      %s185 = smul.addr %s184, 4
      %s186 = scalar_lea.vmem %s0, %s185
      %p187 = pneg %p49
      %p188 = pneg %p46
      %p189 = scmp.lt.s32.totalorder %s19, 0
      %s190 = scalar_select %p189, %s19, 0
      %s191 = scalar_lea.vmem %s1, %s190
      %p192 = pneg %p75
      %p193 = pneg %p72
      %p194 = scmp.lt.s32.totalorder %s19, 0
      %s195 = scalar_select %p194, %s19, 0
      %s196 = scalar_lea.vmem %s2, %s195
      %p197 = pneg %p101
      %p198 = pneg %p98
      %p199 = pneg %p129
      %p200 = pneg %p126
      %s201 = smul.u32 32, %s18
      %p202 = scmp.lt.s32.totalorder %s201, 63
      %s203 = scalar_select %p202, %s201, 63
      %p204 = scmp.lt.s32.totalorder %s19, 0
      %s205 = scalar_select %p204, %s19, 0
      %s206 = sadd.s32 %s205, %s203
      %s207 = smul.addr %s206, 4
      %s208 = scalar_lea.vmem %s3, %s207
      %s209 = smul.u32 32, %s18
      %p210 = scmp.lt.s32.totalorder %s209, 63
      %s211 = scalar_select %p210, %s209, 63
      %p212 = scmp.lt.s32.totalorder %s19, 0
      %s213 = scalar_select %p212, %s19, 0
      %s214 = sadd.s32 %s213, %s211
      %s215 = smul.addr %s214, 4
      %s216 = scalar_lea.vmem %s0, %s215
      %s217 = smul.u32 32, %s18
      %p218 = scmp.lt.s32.totalorder %s19, 0
      %s219 = scalar_select %p218, %s19, 0
      %s220 = scalar_lea.vmem %s1, %s219
      %p221 = scmp.lt.s32.totalorder %s19, 0
      %s222 = scalar_select %p221, %s19, 0
      %s223 = scalar_lea.vmem %s2, %s222
      %s224 = smul.u32 32, %s18
      %p225 = scmp.lt.s32.totalorder %s224, 63
      %s226 = scalar_select %p225, %s224, 63
      %p227 = scmp.lt.s32.totalorder %s19, 0
      %s228 = scalar_select %p227, %s19, 0
      %s229 = sadd.s32 %s228, %s226
      %s230 = smul.addr %s229, 4
      %s231 = scalar_lea.vmem %s3, %s230
      %s232 = smul.u32 32, %s18
      %v233 = vld [vmem:[%s216] sm:$0xf]
      %v234 = vld [vmem:[%s216 + $0x4] sm:$0xf]
      %v235 = vld [vmem:[%s216 + $0x8] sm:$0xf]
      %v236 = vld [vmem:[%s216 + $0xc] sm:$0xf]
      %v237 = vld [vmem:[%s216 + $0x10] sm:$0xf]
      %v238 = vld [vmem:[%s216 + $0x14] sm:$0xf]
      %v239 = vld [vmem:[%s216 + $0x18] sm:$0xf]
      %v240 = vld [vmem:[%s216 + $0x1c] sm:$0xf]
      %v241 = vld [vmem:[%s216 + $0x20] sm:$0xf]
      %v242 = vld [vmem:[%s216 + $0x24] sm:$0xf]
      %v243 = vld [vmem:[%s216 + $0x28] sm:$0xf]
      %v244 = vld [vmem:[%s216 + $0x2c] sm:$0xf]
      %v245 = vld [vmem:[%s216 + $0x30] sm:$0xf]
      %v246 = vld [vmem:[%s216 + $0x34] sm:$0xf]
      %v247 = vld [vmem:[%s216 + $0x38] sm:$0xf]
      %v248 = vld [vmem:[%s216 + $0x3c] sm:$0xf]
      %v249 = vld [vmem:[%s216 + $0x40] sm:$0xf]
      %v250 = vld [vmem:[%s216 + $0x44] sm:$0xf]
      %v251 = vld [vmem:[%s216 + $0x48] sm:$0xf]
      %v252 = vld [vmem:[%s216 + $0x4c] sm:$0xf]
      %v253 = vld [vmem:[%s216 + $0x50] sm:$0xf]
      %v254 = vld [vmem:[%s216 + $0x54] sm:$0xf]
      %v255 = vld [vmem:[%s216 + $0x58] sm:$0xf]
      %v256 = vld [vmem:[%s216 + $0x5c] sm:$0xf]
      %v257 = vld [vmem:[%s216 + $0x60] sm:$0xf]
      %v258 = vld [vmem:[%s216 + $0x64] sm:$0xf]
      %v259 = vld [vmem:[%s216 + $0x68] sm:$0xf]
      %v260 = vld [vmem:[%s216 + $0x6c] sm:$0xf]
      %v261 = vld [vmem:[%s216 + $0x70] sm:$0xf]
      %v262 = vld [vmem:[%s216 + $0x74] sm:$0xf]
      %v263 = vld [vmem:[%s216 + $0x78] sm:$0xf]
      %v264 = vld [vmem:[%s216 + $0x7c] sm:$0xf]
      %v265 = vunpack.c.l.bf16 %v233
      %v266 = vunpack.c.l.bf16 %v234
      %v267 = vunpack.c.l.bf16 %v235
      %v268 = vunpack.c.l.bf16 %v236
      %v269 = vunpack.c.l.bf16 %v237
      %v270 = vunpack.c.l.bf16 %v238
      %v271 = vunpack.c.l.bf16 %v239
      %v272 = vunpack.c.l.bf16 %v240
      %v273 = vunpack.c.l.bf16 %v241
      %v274 = vunpack.c.l.bf16 %v242
      %v275 = vunpack.c.l.bf16 %v243
      %v276 = vunpack.c.l.bf16 %v244
      %v277 = vunpack.c.l.bf16 %v245
      %v278 = vunpack.c.l.bf16 %v246
      %v279 = vunpack.c.l.bf16 %v247
      %v280 = vunpack.c.l.bf16 %v248
      %v281 = vunpack.c.l.bf16 %v249
      %v282 = vunpack.c.l.bf16 %v250
      %v283 = vunpack.c.l.bf16 %v251
      %v284 = vunpack.c.l.bf16 %v252
      %v285 = vunpack.c.l.bf16 %v253
      %v286 = vunpack.c.l.bf16 %v254
      %v287 = vunpack.c.l.bf16 %v255
      %v288 = vunpack.c.l.bf16 %v256
      %v289 = vunpack.c.l.bf16 %v257
      %v290 = vunpack.c.l.bf16 %v258
      %v291 = vunpack.c.l.bf16 %v259
      %v292 = vunpack.c.l.bf16 %v260
      %v293 = vunpack.c.l.bf16 %v261
      %v294 = vunpack.c.l.bf16 %v262
      %v295 = vunpack.c.l.bf16 %v263
      %v296 = vunpack.c.l.bf16 %v264
      %v297 = vld [vmem:[%s220] sm:$0x1]
      %v299 = vlaneseq
      %v300 = vshrl.u32 %v299, 7
      %v301 = vsub.s32 0, %v300
      %v302 = vrot.slane %v297, %v301
      %v304 = vmul.f32 %v265, %v302
      %v305 = vmul.f32 %v266, %v302
      %v306 = vmul.f32 %v267, %v302
      %v307 = vmul.f32 %v268, %v302
      %v308 = vmul.f32 %v269, %v302
      %v309 = vmul.f32 %v270, %v302
      %v310 = vmul.f32 %v271, %v302
      %v311 = vmul.f32 %v272, %v302
      %v312 = vmul.f32 %v273, %v302
      %v313 = vmul.f32 %v274, %v302
      %v314 = vmul.f32 %v275, %v302
      %v315 = vmul.f32 %v276, %v302
      %v316 = vmul.f32 %v277, %v302
      %v317 = vmul.f32 %v278, %v302
      %v318 = vmul.f32 %v279, %v302
      %v319 = vmul.f32 %v280, %v302
      %v320 = vmul.f32 %v281, %v302
      %v321 = vmul.f32 %v282, %v302
      %v322 = vmul.f32 %v283, %v302
      %v323 = vmul.f32 %v284, %v302
      %v324 = vmul.f32 %v285, %v302
      %v325 = vmul.f32 %v286, %v302
      %v326 = vmul.f32 %v287, %v302
      %v327 = vmul.f32 %v288, %v302
      %v328 = vmul.f32 %v289, %v302
      %v329 = vmul.f32 %v290, %v302
      %v330 = vmul.f32 %v291, %v302
      %v331 = vmul.f32 %v292, %v302
      %v332 = vmul.f32 %v293, %v302
      %v333 = vmul.f32 %v294, %v302
      %v334 = vmul.f32 %v295, %v302
      %v335 = vmul.f32 %v296, %v302
      %v336 = vld [vmem:[%s223] sm:$0x1]
      %v338 = vlaneseq
      %v339 = vshrl.u32 %v338, 7
      %v340 = vsub.s32 0, %v339
      %v341 = vrot.slane %v336, %v340
      %v343 = vadd.f32 %v304, %v341
      %v344 = vadd.f32 %v305, %v341
      %v345 = vadd.f32 %v306, %v341
      %v346 = vadd.f32 %v307, %v341
      %v347 = vadd.f32 %v308, %v341
      %v348 = vadd.f32 %v309, %v341
      %v349 = vadd.f32 %v310, %v341
      %v350 = vadd.f32 %v311, %v341
      %v351 = vadd.f32 %v312, %v341
      %v352 = vadd.f32 %v313, %v341
      %v353 = vadd.f32 %v314, %v341
      %v354 = vadd.f32 %v315, %v341
      %v355 = vadd.f32 %v316, %v341
      %v356 = vadd.f32 %v317, %v341
      %v357 = vadd.f32 %v318, %v341
      %v358 = vadd.f32 %v319, %v341
      %v359 = vadd.f32 %v320, %v341
      %v360 = vadd.f32 %v321, %v341
      %v361 = vadd.f32 %v322, %v341
      %v362 = vadd.f32 %v323, %v341
      %v363 = vadd.f32 %v324, %v341
      %v364 = vadd.f32 %v325, %v341
      %v365 = vadd.f32 %v326, %v341
      %v366 = vadd.f32 %v327, %v341
      %v367 = vadd.f32 %v328, %v341
      %v368 = vadd.f32 %v329, %v341
      %v369 = vadd.f32 %v330, %v341
      %v370 = vadd.f32 %v331, %v341
      %v371 = vadd.f32 %v332, %v341
      %v372 = vadd.f32 %v333, %v341
      %v373 = vadd.f32 %v334, %v341
      %v374 = vadd.f32 %v335, %v341
      %v375 = vmax.f32 %v343, 0.0
      %v376 = vmax.f32 %v344, 0.0
      %v377 = vmax.f32 %v345, 0.0
      %v378 = vmax.f32 %v346, 0.0
      %v379 = vmax.f32 %v347, 0.0
      %v380 = vmax.f32 %v348, 0.0
      %v381 = vmax.f32 %v349, 0.0
      %v382 = vmax.f32 %v350, 0.0
      %v383 = vmax.f32 %v351, 0.0
      %v384 = vmax.f32 %v352, 0.0
      %v385 = vmax.f32 %v353, 0.0
      %v386 = vmax.f32 %v354, 0.0
      %v387 = vmax.f32 %v355, 0.0
      %v388 = vmax.f32 %v356, 0.0
      %v389 = vmax.f32 %v357, 0.0
      %v390 = vmax.f32 %v358, 0.0
      %v391 = vmax.f32 %v359, 0.0
      %v392 = vmax.f32 %v360, 0.0
      %v393 = vmax.f32 %v361, 0.0
      %v394 = vmax.f32 %v362, 0.0
      %v395 = vmax.f32 %v363, 0.0
      %v396 = vmax.f32 %v364, 0.0
      %v397 = vmax.f32 %v365, 0.0
      %v398 = vmax.f32 %v366, 0.0
      %v399 = vmax.f32 %v367, 0.0
      %v400 = vmax.f32 %v368, 0.0
      %v401 = vmax.f32 %v369, 0.0
      %v402 = vmax.f32 %v370, 0.0
      %v403 = vmax.f32 %v371, 0.0
      %v404 = vmax.f32 %v372, 0.0
      %v405 = vmax.f32 %v373, 0.0
      %v406 = vmax.f32 %v374, 0.0
      %v407 = vpack.c.bf16 %v376, %v375
      %v408 = vpack.c.bf16 %v378, %v377
      %v409 = vpack.c.bf16 %v380, %v379
      %v410 = vpack.c.bf16 %v382, %v381
      %v411 = vpack.c.bf16 %v384, %v383
      %v412 = vpack.c.bf16 %v386, %v385
      %v413 = vpack.c.bf16 %v388, %v387
      %v414 = vpack.c.bf16 %v390, %v389
      %v415 = vpack.c.bf16 %v392, %v391
      %v416 = vpack.c.bf16 %v394, %v393
      %v417 = vpack.c.bf16 %v396, %v395
      %v418 = vpack.c.bf16 %v398, %v397
      %v419 = vpack.c.bf16 %v400, %v399
      %v420 = vpack.c.bf16 %v402, %v401
      %v421 = vpack.c.bf16 %v404, %v403
      %v422 = vpack.c.bf16 %v406, %v405
      %v439 = vunpack.c.l.b16 %v407
      %v440 = vunpack.c.h.b16 %v407
      %v441 = vunpack.c.l.b16 %v408
      %v442 = vunpack.c.h.b16 %v408
      %v443 = vunpack.c.l.b16 %v409
      %v444 = vunpack.c.h.b16 %v409
      %v445 = vunpack.c.l.b16 %v410
      %v446 = vunpack.c.h.b16 %v410
      %v447 = vunpack.c.l.b16 %v411
      %v448 = vunpack.c.h.b16 %v411
      %v449 = vunpack.c.l.b16 %v412
      %v450 = vunpack.c.h.b16 %v412
      %v451 = vunpack.c.l.b16 %v413
      %v452 = vunpack.c.h.b16 %v413
      %v453 = vunpack.c.l.b16 %v414
      %v454 = vunpack.c.h.b16 %v414
      %v455 = vunpack.c.l.b16 %v415
      %v456 = vunpack.c.h.b16 %v415
      %v457 = vunpack.c.l.b16 %v416
      %v458 = vunpack.c.h.b16 %v416
      %v459 = vunpack.c.l.b16 %v417
      %v460 = vunpack.c.h.b16 %v417
      %v461 = vunpack.c.l.b16 %v418
      %v462 = vunpack.c.h.b16 %v418
      %v463 = vunpack.c.l.b16 %v419
      %v464 = vunpack.c.h.b16 %v419
      %v465 = vunpack.c.l.b16 %v420
      %v466 = vunpack.c.h.b16 %v420
      %v467 = vunpack.c.l.b16 %v421
      %v468 = vunpack.c.h.b16 %v421
      %v469 = vunpack.c.l.b16 %v422
      %v470 = vunpack.c.h.b16 %v422
      %v471 = vpack.c.b16 %v439, %v439
      %v472 = vpack.c.b16 %v440, %v440
      %v473 = vpack.c.b16 %v441, %v441
      %v474 = vpack.c.b16 %v442, %v442
      %v475 = vpack.c.b16 %v443, %v443
      %v476 = vpack.c.b16 %v444, %v444
      %v477 = vpack.c.b16 %v445, %v445
      %v478 = vpack.c.b16 %v446, %v446
      %v479 = vpack.c.b16 %v447, %v447
      %v480 = vpack.c.b16 %v448, %v448
      %v481 = vpack.c.b16 %v449, %v449
      %v482 = vpack.c.b16 %v450, %v450
      %v483 = vpack.c.b16 %v451, %v451
      %v484 = vpack.c.b16 %v452, %v452
      %v485 = vpack.c.b16 %v453, %v453
      %v486 = vpack.c.b16 %v454, %v454
      %v487 = vpack.c.b16 %v455, %v455
      %v488 = vpack.c.b16 %v456, %v456
      %v489 = vpack.c.b16 %v457, %v457
      %v490 = vpack.c.b16 %v458, %v458
      %v491 = vpack.c.b16 %v459, %v459
      %v492 = vpack.c.b16 %v460, %v460
      %v493 = vpack.c.b16 %v461, %v461
      %v494 = vpack.c.b16 %v462, %v462
      %v495 = vpack.c.b16 %v463, %v463
      %v496 = vpack.c.b16 %v464, %v464
      %v497 = vpack.c.b16 %v465, %v465
      %v498 = vpack.c.b16 %v466, %v466
      %v499 = vpack.c.b16 %v467, %v467
      %v500 = vpack.c.b16 %v468, %v468
      %v501 = vpack.c.b16 %v469, %v469
      %v502 = vpack.c.b16 %v470, %v470
      %535 = vst [vmem:[%s231] sm:$0xf] %v471
      %536 = vst [vmem:[%s231 + $0x4] sm:$0xf] %v472
      %537 = vst [vmem:[%s231 + $0x8] sm:$0xf] %v473
      %538 = vst [vmem:[%s231 + $0xc] sm:$0xf] %v474
      %539 = vst [vmem:[%s231 + $0x10] sm:$0xf] %v475
      %540 = vst [vmem:[%s231 + $0x14] sm:$0xf] %v476
      %541 = vst [vmem:[%s231 + $0x18] sm:$0xf] %v477
      %542 = vst [vmem:[%s231 + $0x1c] sm:$0xf] %v478
      %543 = vst [vmem:[%s231 + $0x20] sm:$0xf] %v479
      %544 = vst [vmem:[%s231 + $0x24] sm:$0xf] %v480
      %545 = vst [vmem:[%s231 + $0x28] sm:$0xf] %v481
      %546 = vst [vmem:[%s231 + $0x2c] sm:$0xf] %v482
      %547 = vst [vmem:[%s231 + $0x30] sm:$0xf] %v483
      %548 = vst [vmem:[%s231 + $0x34] sm:$0xf] %v484
      %549 = vst [vmem:[%s231 + $0x38] sm:$0xf] %v485
      %550 = vst [vmem:[%s231 + $0x3c] sm:$0xf] %v486
      %551 = vst [vmem:[%s231 + $0x40] sm:$0xf] %v487
      %552 = vst [vmem:[%s231 + $0x44] sm:$0xf] %v488
      %553 = vst [vmem:[%s231 + $0x48] sm:$0xf] %v489
      %554 = vst [vmem:[%s231 + $0x4c] sm:$0xf] %v490
      %555 = vst [vmem:[%s231 + $0x50] sm:$0xf] %v491
      %556 = vst [vmem:[%s231 + $0x54] sm:$0xf] %v492
      %557 = vst [vmem:[%s231 + $0x58] sm:$0xf] %v493
      %558 = vst [vmem:[%s231 + $0x5c] sm:$0xf] %v494
      %559 = vst [vmem:[%s231 + $0x60] sm:$0xf] %v495
      %560 = vst [vmem:[%s231 + $0x64] sm:$0xf] %v496
      %561 = vst [vmem:[%s231 + $0x68] sm:$0xf] %v497
      %562 = vst [vmem:[%s231 + $0x6c] sm:$0xf] %v498
      %563 = vst [vmem:[%s231 + $0x70] sm:$0xf] %v499
      %564 = vst [vmem:[%s231 + $0x74] sm:$0xf] %v500
      %565 = vst [vmem:[%s231 + $0x78] sm:$0xf] %v501
      %566 = vst [vmem:[%s231 + $0x7c] sm:$0xf] %v502
      %s567 = smul.u32 32, %s18
      %p568 = scmp.lt.s32.totalorder %s567, 63
      %s569 = scalar_select %p568, %s567, 63
      %p570 = scmp.lt.s32.totalorder %s19, 0
      %s571 = scalar_select %p570, %s19, 0
      %s572 = sadd.s32 %s571, %s569
      %s573 = smul.addr %s572, 4
      %s574 = scalar_lea.vmem %s3, %s573
      // Predicated region
      $region33: #{conv_bn_relu_forward.3} parent=31 // pred_check
        %p575 = pneg %p126
      $region34: #{conv_bn_relu_forward.3} parent=31 // pred_check_branch
        %577 = sbr.rel (%p575) target = $region36
      $region35: #{conv_bn_relu_forward.3} parent=31 // pred_region
        %s578 = smul.u32 32, %s18
      $region36: #{conv_bn_relu_forward.3} parent=31 // pred_fallthru
        _
    $region32: #{conv_bn_relu_forward.3} parent=5 // pred_fallthru
      _
    %p579 = scmp.le.s32.totalorder 2, %s9
    // Predicated region
    $region37: #{conv_bn_relu_forward.3} parent=5 // pred_check
      %p580 = pneg %p579
    $region38: #{conv_bn_relu_forward.3} parent=5 // pred_check_branch
      %582 = sbr.rel (%p580) target = $region40
    $region39: #{conv_bn_relu_forward.3} parent=5 // pred_region
      %s583 = ssub.s32 %s9, 2
      // Predicated region
      $region41: #{conv_bn_relu_forward.3} parent=39 // pred_check
        %p584 = pneg %p132
      $region42: #{conv_bn_relu_forward.3} parent=39 // pred_check_branch
        %586 = sbr.rel (%p584) target = $region44
      $region43: #{conv_bn_relu_forward.3} parent=39 // pred_region
        %s587 = smul.u32 32, %s20
        %p588 = scmp.lt.s32.totalorder %s587, 63
        %s589 = scalar_select %p588, %s587, 63
        %p590 = scmp.lt.s32.totalorder %s21, 0
        %s591 = scalar_select %p590, %s21, 0
        %s592 = sadd.s32 %s591, %s589
        %s593 = smul.addr %s592, 4
        %s594 = scalar_lea.vmem %s3, %s593
      $region44: #{conv_bn_relu_forward.3} parent=39 // pred_fallthru
        _
    $region40: #{conv_bn_relu_forward.3} parent=5 // pred_fallthru
      _
  $region6: #{conv_bn_relu_forward.3} parent=0 // loop_footer
    %s13 = sadd.s32 1, %s9
  $region7: #{conv_bn_relu_forward.3} parent=0 // loop_footer_branch
    %8 = sbr.rel target = $region3
  $region8: #{conv_bn_relu_forward.3} parent=0 // loop_exit
    _

// kernel: conv_bn_relu_forward.2
$region0: #{conv_bn_relu_forward.2}
  #allocation0 [shape = 'u32[]', space=smem, size = 0x4, offset = 0x4, fixed_abs, tag = 'smem constant byte address 0x4 - core index']
  #allocation1 [shape = 'u32[144,128]{1,0:T(1,128)}', space=vmem, size = 0x12000, scoped, tag = 'internal scratch']
  %s0 = inlined_call_operand.vmem [shape: bf16[512,128], index: 0, kind: input, shape index: {}]
  %s1 = inlined_call_operand.vmem [shape: bf16[128,128], index: 1, kind: input, shape index: {}]
  %s2 = inlined_call_operand.vmem [shape: bf16[512,128], index: 2, kind: output, shape index: {0}]
  %s3 = inlined_call_operand.vmem [shape: f32[2,1,128], index: 3, kind: output, shape index: {1}]
  %s4 = inlined_call_operand.vmem [shape: f32[2,1,128], index: 4, kind: output, shape index: {2}]
  %5 = xla_tuple %s2, %s3, %s4
  %s6 = sld [smem:[#allocation0]]
  $region57: #{conv_bn_relu_forward.2} parent=0
    _
  %s8 = ssub.s32 1, %s6
  %s9 = scalar_select 0, %s8, %s6
  loop: start=0, step=1, limit=4
  $region2: #{conv_bn_relu_forward.2} parent=0 // loop_pre_header
    _
  $region3: #{conv_bn_relu_forward.2} parent=0 // loop_header
    %s11 = sphi 0, %s15
    %p12 = scmp.ge.s32.totalorder %s11, 4
    %s18 = sphi 0, %s30
    %s19 = sphi 0, %s26
    %s20 = sphi 0, %s18
    %s21 = sphi 0, %s19
    %s22 = sphi 0, %s20
    %s23 = sphi 0, %s21
    %s33 = sphi 0, %s35
    %s36 = sphi 0, %s33
    %s37 = sphi 0, %s36
    %s53 = sphi 0, %s37
    %s59 = sphi 0, %s61
    %s62 = sphi 0, %s59
    %s63 = sphi 0, %s62
    %s79 = sphi 0, %s63
    %s87 = sphi 0, %s89
    %s90 = sphi 0, %s87
    %s91 = sphi 0, %s90
    %s107 = sphi 0, %s91
    %s115 = sphi 0, %s117
    %s118 = sphi 0, %s115
    %s119 = sphi 0, %s118
    %s135 = sphi 0, %s119
    %s143 = sphi 0, %s145
    %s146 = sphi 0, %s143
    %s147 = sphi 0, %s146
    %s163 = sphi 0, %s147
  $region4: #{conv_bn_relu_forward.2} parent=0 // loop_header_branch
    %14 = sbr.rel (%p12) target = $region8
  $region5: #{conv_bn_relu_forward.2} parent=0 // loop_body
    %s16 = ssub.s32 %s11, 1
    %s17 = ssub.s32 %s11, 2
    %s24 = sadd.s32 1, %s19
    %p25 = scmp.ge.s32.totalorder %s24, 1
    %s26 = scalar_select %p25, 0, %s24
    %s27 = sadd.s32 1, %s18
    %s28 = scalar_select %p25, %s27, %s18
    %p29 = scmp.ge.s32.totalorder %s28, 2
    %s30 = scalar_select %p29, 0, %s28
    %s31 = ssub.s32 %s18, %s30
    %p32 = scmp.eq.s32.totalorder %s31, 0
    %s34 = sadd.s32 %s33, 1
    %s35 = scalar_select %p32, %s33, %s34
    %p38 = pneg %p32
    %p39 = scmp.eq.s32.totalorder %s11, 1
    %p40 = por %p38, %p39
    %p41 = scmp.ne.s32.totalorder %s33, %s36
    %p42 = scmp.eq.s32.totalorder %s11, 0
    %p43 = por %p41, %p42
    %p44 = scmp.ne.s32.totalorder %s33, %s36
    %p45 = scmp.eq.s32.totalorder %s16, 1
    %p46 = por %p44, %p45
    %p47 = scmp.ne.s32.totalorder %s36, %s37
    %p48 = scmp.eq.s32.totalorder %s16, 0
    %p49 = por %p47, %p48
    %p50 = scmp.ne.s32.totalorder %s36, %s37
    %p51 = scmp.eq.s32.totalorder %s17, 1
    %p52 = por %p50, %p51
    %p54 = scmp.ne.s32.totalorder %s37, %s53
    %p55 = scmp.eq.s32.totalorder %s17, 0
    %p56 = por %p54, %p55
    %s57 = ssub.s32 %s19, %s26
    %p58 = scmp.eq.s32.totalorder %s57, 0
    %s60 = sadd.s32 %s59, 1
    %s61 = scalar_select %p58, %s59, %s60
    %p64 = pneg %p58
    %p65 = scmp.eq.s32.totalorder %s11, 1
    %p66 = por %p64, %p65
    %p67 = scmp.ne.s32.totalorder %s59, %s62
    %p68 = scmp.eq.s32.totalorder %s11, 0
    %p69 = por %p67, %p68
    %p70 = scmp.ne.s32.totalorder %s59, %s62
    %p71 = scmp.eq.s32.totalorder %s16, 1
    %p72 = por %p70, %p71
    %p73 = scmp.ne.s32.totalorder %s62, %s63
    %p74 = scmp.eq.s32.totalorder %s16, 0
    %p75 = por %p73, %p74
    %p76 = scmp.ne.s32.totalorder %s62, %s63
    %p77 = scmp.eq.s32.totalorder %s17, 1
    %p78 = por %p76, %p77
    %p80 = scmp.ne.s32.totalorder %s63, %s79
    %p81 = scmp.eq.s32.totalorder %s17, 0
    %p82 = por %p80, %p81
    %s83 = ssub.s32 %s18, %s30
    %s84 = ssub.s32 %s19, %s26
    %s85 = sor.u32 %s83, %s84
    %p86 = scmp.eq.s32.totalorder %s85, 0
    %s88 = sadd.s32 %s87, 1
    %s89 = scalar_select %p86, %s87, %s88
    %p92 = pneg %p86
    %p93 = scmp.eq.s32.totalorder %s11, 1
    %p94 = por %p92, %p93
    %p95 = scmp.ne.s32.totalorder %s87, %s90
    %p96 = scmp.eq.s32.totalorder %s11, 0
    %p97 = por %p95, %p96
    %p98 = scmp.ne.s32.totalorder %s87, %s90
    %p99 = scmp.eq.s32.totalorder %s16, 1
    %p100 = por %p98, %p99
    %p101 = scmp.ne.s32.totalorder %s90, %s91
    %p102 = scmp.eq.s32.totalorder %s16, 0
    %p103 = por %p101, %p102
    %p104 = scmp.ne.s32.totalorder %s90, %s91
    %p105 = scmp.eq.s32.totalorder %s17, 1
    %p106 = por %p104, %p105
    %p108 = scmp.ne.s32.totalorder %s91, %s107
    %p109 = scmp.eq.s32.totalorder %s17, 0
    %p110 = por %p108, %p109
    %s111 = ssub.s32 %s18, %s30
    %s112 = ssub.s32 %s19, %s26
    %s113 = sor.u32 %s111, %s112
    %p114 = scmp.eq.s32.totalorder %s113, 0
    %s116 = sadd.s32 %s115, 1
    %s117 = scalar_select %p114, %s115, %s116
    %p120 = pneg %p114
    %p121 = scmp.eq.s32.totalorder %s11, 1
    %p122 = por %p120, %p121
    %p123 = scmp.ne.s32.totalorder %s115, %s118
    %p124 = scmp.eq.s32.totalorder %s11, 0
    %p125 = por %p123, %p124
    %p126 = scmp.ne.s32.totalorder %s115, %s118
    %p127 = scmp.eq.s32.totalorder %s16, 1
    %p128 = por %p126, %p127
    %p129 = scmp.ne.s32.totalorder %s118, %s119
    %p130 = scmp.eq.s32.totalorder %s16, 0
    %p131 = por %p129, %p130
    %p132 = scmp.ne.s32.totalorder %s118, %s119
    %p133 = scmp.eq.s32.totalorder %s17, 1
    %p134 = por %p132, %p133
    %p136 = scmp.ne.s32.totalorder %s119, %s135
    %p137 = scmp.eq.s32.totalorder %s17, 0
    %p138 = por %p136, %p137
    %s139 = ssub.s32 %s18, %s30
    %s140 = ssub.s32 %s19, %s26
    %s141 = sor.u32 %s139, %s140
    %p142 = scmp.eq.s32.totalorder %s141, 0
    %s144 = sadd.s32 %s143, 1
    %s145 = scalar_select %p142, %s143, %s144
    %p148 = pneg %p142
    %p149 = scmp.eq.s32.totalorder %s11, 1
    %p150 = por %p148, %p149
    %p151 = scmp.ne.s32.totalorder %s143, %s146
    %p152 = scmp.eq.s32.totalorder %s11, 0
    %p153 = por %p151, %p152
    %p154 = scmp.ne.s32.totalorder %s143, %s146
    %p155 = scmp.eq.s32.totalorder %s16, 1
    %p156 = por %p154, %p155
    %p157 = scmp.ne.s32.totalorder %s146, %s147
    %p158 = scmp.eq.s32.totalorder %s16, 0
    %p159 = por %p157, %p158
    %p160 = scmp.ne.s32.totalorder %s146, %s147
    %p161 = scmp.eq.s32.totalorder %s17, 1
    %p162 = por %p160, %p161
    %p164 = scmp.ne.s32.totalorder %s147, %s163
    %p165 = scmp.eq.s32.totalorder %s17, 0
    %p166 = por %p164, %p165
    %p167 = scmp.le.s32.totalorder 1, %s11
    %p168 = scmp.lt.s32.totalorder %s11, 3
    %p169 = pnand %p167, %p168
    %p170 = pneg %p169
    // Predicated region
    $region9: #{conv_bn_relu_forward.2} parent=5 // pred_check
      _
    $region10: #{conv_bn_relu_forward.2} parent=5 // pred_check_branch
      %172 = sbr.rel (%p169) target = $region12
    $region11: #{conv_bn_relu_forward.2} parent=5 // pred_region
      %s173 = ssub.s32 %s11, 1
      // Predicated region
      $region13: #{conv_bn_relu_forward.2} parent=11 // pred_check
        %p174 = pneg %p75
      $region14: #{conv_bn_relu_forward.2} parent=11 // pred_check_branch
        %176 = sbr.rel (%p174) target = $region16
      $region15: #{conv_bn_relu_forward.2} parent=11 // pred_region
        %p177 = scmp.lt.s32.totalorder %s21, 0
        %s178 = scalar_select %p177, %s21, 0
        %s179 = smul.addr %s178, 4
        %s180 = scalar_lea.vmem %s1, %s179
      $region16: #{conv_bn_relu_forward.2} parent=11 // pred_fallthru
        _
    $region12: #{conv_bn_relu_forward.2} parent=5 // pred_fallthru
      _
    %p181 = scmp.lt.s32.totalorder %s11, 2
    // Predicated region
    $region17: #{conv_bn_relu_forward.2} parent=5 // pred_check
      %p182 = pneg %p181
    $region18: #{conv_bn_relu_forward.2} parent=5 // pred_check_branch
      %184 = sbr.rel (%p182) target = $region20
    $region19: #{conv_bn_relu_forward.2} parent=5 // pred_region
      // Predicated region
      $region21: #{conv_bn_relu_forward.2} parent=19 // pred_check
        %p185 = pneg %p43
      $region22: #{conv_bn_relu_forward.2} parent=19 // pred_check_branch
        %187 = sbr.rel (%p185) target = $region24
      $region23: #{conv_bn_relu_forward.2} parent=19 // pred_region
        %s188 = smul.u32 32, %s18
        %p189 = scmp.lt.s32.totalorder %s188, 63
        %s190 = scalar_select %p189, %s188, 63
        %s191 = smul.addr %s190, 4
        %s192 = scalar_lea.vmem %s0, %s191
        %s193 = smul.u32 32, %s18
      $region24: #{conv_bn_relu_forward.2} parent=19 // pred_fallthru
        _
    $region20: #{conv_bn_relu_forward.2} parent=5 // pred_fallthru
      _
    %p194 = scmp.le.s32.totalorder 1, %s11
    %p195 = scmp.lt.s32.totalorder %s11, 3
    %p196 = pnand %p194, %p195
    %p197 = pneg %p196
    // Predicated region
    $region25: #{conv_bn_relu_forward.2} parent=5 // pred_check
      _
    $region26: #{conv_bn_relu_forward.2} parent=5 // pred_check_branch
      %199 = sbr.rel (%p196) target = $region28
    $region27: #{conv_bn_relu_forward.2} parent=5 // pred_region
      %s200 = ssub.s32 %s11, 1
      %s201 = smul.u32 32, %s20
      %p202 = scmp.lt.s32.totalorder %s201, 63
      %s203 = scalar_select %p202, %s201, 63
      %s204 = smul.addr %s203, 4
      %s205 = scalar_lea.vmem %s0, %s204
      %p206 = pneg %p49
      %p207 = pneg %p46
      %p208 = scmp.lt.s32.totalorder %s21, 0
      %s209 = scalar_select %p208, %s21, 0
      %s210 = smul.addr %s209, 4
      %s211 = scalar_lea.vmem %s1, %s210
      %p212 = pneg %p75
      %p213 = pneg %p72
      %p214 = pneg %p103
      %p215 = pneg %p100
      %s216 = smul.u32 32, %s20
      %p217 = scmp.lt.s32.totalorder %s216, 63
      %s218 = scalar_select %p217, %s216, 63
      %p219 = scmp.lt.s32.totalorder %s21, 0
      %s220 = scalar_select %p219, %s21, 0
      %s221 = sadd.s32 %s220, %s218
      %s222 = smul.addr %s221, 4
      %s223 = scalar_lea.vmem %s2, %s222
      %p224 = pneg %p131
      %p225 = pneg %p128
      %p226 = scmp.lt.s32.totalorder %s20, 1
      %s227 = scalar_select %p226, %s20, 1
      %p228 = scmp.lt.s32.totalorder %s21, 0
      %s229 = scalar_select %p228, %s21, 0
      %s230 = sadd.s32 %s229, %s227
      %s231 = scalar_lea.vmem %s3, %s230
      %p232 = pneg %p159
      %p233 = pneg %p156
      %p234 = scmp.lt.s32.totalorder %s20, 1
      %s235 = scalar_select %p234, %s20, 1
      %p236 = scmp.lt.s32.totalorder %s21, 0
      %s237 = scalar_select %p236, %s21, 0
      %s238 = sadd.s32 %s237, %s235
      %s239 = scalar_lea.vmem %s4, %s238
      %s240 = smul.u32 32, %s20
      %p241 = scmp.lt.s32.totalorder %s240, 63
      %s242 = scalar_select %p241, %s240, 63
      %s243 = smul.addr %s242, 4
      %s244 = scalar_lea.vmem %s0, %s243
      %s245 = smul.u32 32, %s20
      %p246 = scmp.lt.s32.totalorder %s21, 0
      %s247 = scalar_select %p246, %s21, 0
      %s248 = smul.addr %s247, 4
      %s249 = scalar_lea.vmem %s1, %s248
      %s250 = smul.u32 32, %s20
      %p251 = scmp.lt.s32.totalorder %s250, 63
      %s252 = scalar_select %p251, %s250, 63
      %p253 = scmp.lt.s32.totalorder %s21, 0
      %s254 = scalar_select %p253, %s21, 0
      %s255 = sadd.s32 %s254, %s252
      %s256 = smul.addr %s255, 4
      %s257 = scalar_lea.vmem %s2, %s256
      %s258 = smul.u32 32, %s20
      %p259 = scmp.lt.s32.totalorder %s20, 1
      %s260 = scalar_select %p259, %s20, 1
      %p261 = scmp.lt.s32.totalorder %s21, 0
      %s262 = scalar_select %p261, %s21, 0
      %s263 = sadd.s32 %s262, %s260
      %s264 = scalar_lea.vmem %s3, %s263
      %p265 = scmp.lt.s32.totalorder %s20, 1
      %s266 = scalar_select %p265, %s20, 1
      %p267 = scmp.lt.s32.totalorder %s21, 0
      %s268 = scalar_select %p267, %s21, 0
      %s269 = sadd.s32 %s268, %s266
      %s270 = scalar_lea.vmem %s4, %s269
      %v272 = vld [vmem:[%s244] sm:$0xf]
      %v273 = vld [vmem:[%s244 + $0x4] sm:$0xf]
      %v274 = vld [vmem:[%s244 + $0x8] sm:$0xf]
      %v275 = vld [vmem:[%s244 + $0xc] sm:$0xf]
      %v276 = vld [vmem:[%s244 + $0x10] sm:$0xf]
      %v277 = vld [vmem:[%s244 + $0x14] sm:$0xf]
      %v278 = vld [vmem:[%s244 + $0x18] sm:$0xf]
      %v279 = vld [vmem:[%s244 + $0x1c] sm:$0xf]
      %v280 = vld [vmem:[%s244 + $0x20] sm:$0xf]
      %v281 = vld [vmem:[%s244 + $0x24] sm:$0xf]
      %v282 = vld [vmem:[%s244 + $0x28] sm:$0xf]
      %v283 = vld [vmem:[%s244 + $0x2c] sm:$0xf]
      %v284 = vld [vmem:[%s244 + $0x30] sm:$0xf]
      %v285 = vld [vmem:[%s244 + $0x34] sm:$0xf]
      %v286 = vld [vmem:[%s244 + $0x38] sm:$0xf]
      %v287 = vld [vmem:[%s244 + $0x3c] sm:$0xf]
      %v288 = vld [vmem:[%s244 + $0x40] sm:$0xf]
      %v289 = vld [vmem:[%s244 + $0x44] sm:$0xf]
      %v290 = vld [vmem:[%s244 + $0x48] sm:$0xf]
      %v291 = vld [vmem:[%s244 + $0x4c] sm:$0xf]
      %v292 = vld [vmem:[%s244 + $0x50] sm:$0xf]
      %v293 = vld [vmem:[%s244 + $0x54] sm:$0xf]
      %v294 = vld [vmem:[%s244 + $0x58] sm:$0xf]
      %v295 = vld [vmem:[%s244 + $0x5c] sm:$0xf]
      %v296 = vld [vmem:[%s244 + $0x60] sm:$0xf]
      %v297 = vld [vmem:[%s244 + $0x64] sm:$0xf]
      %v298 = vld [vmem:[%s244 + $0x68] sm:$0xf]
      %v299 = vld [vmem:[%s244 + $0x6c] sm:$0xf]
      %v300 = vld [vmem:[%s244 + $0x70] sm:$0xf]
      %v301 = vld [vmem:[%s244 + $0x74] sm:$0xf]
      %v302 = vld [vmem:[%s244 + $0x78] sm:$0xf]
      %v303 = vld [vmem:[%s244 + $0x7c] sm:$0xf]
      %v304 = vld [vmem:[%s249] sm:$0xf]
      %v305 = vld [vmem:[%s249 + $0x4] sm:$0xf]
      %v306 = vld [vmem:[%s249 + $0x8] sm:$0xf]
      %v307 = vld [vmem:[%s249 + $0xc] sm:$0xf]
      %v308 = vld [vmem:[%s249 + $0x10] sm:$0xf]
      %v309 = vld [vmem:[%s249 + $0x14] sm:$0xf]
      %v310 = vld [vmem:[%s249 + $0x18] sm:$0xf]
      %v311 = vld [vmem:[%s249 + $0x1c] sm:$0xf]
      %v312 = vld [vmem:[%s249 + $0x20] sm:$0xf]
      %v313 = vld [vmem:[%s249 + $0x24] sm:$0xf]
      %v314 = vld [vmem:[%s249 + $0x28] sm:$0xf]
      %v315 = vld [vmem:[%s249 + $0x2c] sm:$0xf]
      %v316 = vld [vmem:[%s249 + $0x30] sm:$0xf]
      %v317 = vld [vmem:[%s249 + $0x34] sm:$0xf]
      %v318 = vld [vmem:[%s249 + $0x38] sm:$0xf]
      %v319 = vld [vmem:[%s249 + $0x3c] sm:$0xf]
      %v352 = vunpack.c.l.b16 %v272
      %v353 = vunpack.c.l.b16 %v273
      %v354 = vunpack.c.l.b16 %v274
      %v355 = vunpack.c.l.b16 %v275
      %v356 = vunpack.c.l.b16 %v276
      %v357 = vunpack.c.l.b16 %v277
      %v358 = vunpack.c.l.b16 %v278
      %v359 = vunpack.c.l.b16 %v279
      %v360 = vunpack.c.l.b16 %v280
      %v361 = vunpack.c.l.b16 %v281
      %v362 = vunpack.c.l.b16 %v282
      %v363 = vunpack.c.l.b16 %v283
      %v364 = vunpack.c.l.b16 %v284
      %v365 = vunpack.c.l.b16 %v285
      %v366 = vunpack.c.l.b16 %v286
      %v367 = vunpack.c.l.b16 %v287
      %v368 = vunpack.c.l.b16 %v288
      %v369 = vunpack.c.l.b16 %v289
      %v370 = vunpack.c.l.b16 %v290
      %v371 = vunpack.c.l.b16 %v291
      %v372 = vunpack.c.l.b16 %v292
      %v373 = vunpack.c.l.b16 %v293
      %v374 = vunpack.c.l.b16 %v294
      %v375 = vunpack.c.l.b16 %v295
      %v376 = vunpack.c.l.b16 %v296
      %v377 = vunpack.c.l.b16 %v297
      %v378 = vunpack.c.l.b16 %v298
      %v379 = vunpack.c.l.b16 %v299
      %v380 = vunpack.c.l.b16 %v300
      %v381 = vunpack.c.l.b16 %v301
      %v382 = vunpack.c.l.b16 %v302
      %v383 = vunpack.c.l.b16 %v303
      %v384 = vpack.c.b16 %v353, %v352
      %v385 = vpack.c.b16 %v355, %v354
      %v386 = vpack.c.b16 %v357, %v356
      %v387 = vpack.c.b16 %v359, %v358
      %v388 = vpack.c.b16 %v361, %v360
      %v389 = vpack.c.b16 %v363, %v362
      %v390 = vpack.c.b16 %v365, %v364
      %v391 = vpack.c.b16 %v367, %v366
      %v392 = vpack.c.b16 %v369, %v368
      %v393 = vpack.c.b16 %v371, %v370
      %v394 = vpack.c.b16 %v373, %v372
      %v395 = vpack.c.b16 %v375, %v374
      %v396 = vpack.c.b16 %v377, %v376
      %v397 = vpack.c.b16 %v379, %v378
      %v398 = vpack.c.b16 %v381, %v380
      %v399 = vpack.c.b16 %v383, %v382
      %v432 = vunpack.c.l.b16 %v304
      %v433 = vunpack.c.l.b16 %v305
      %v434 = vunpack.c.l.b16 %v306
      %v435 = vunpack.c.l.b16 %v307
      %v436 = vunpack.c.l.b16 %v308
      %v437 = vunpack.c.l.b16 %v309
      %v438 = vunpack.c.l.b16 %v310
      %v439 = vunpack.c.l.b16 %v311
      %v440 = vunpack.c.l.b16 %v312
      %v441 = vunpack.c.l.b16 %v313
      %v442 = vunpack.c.l.b16 %v314
      %v443 = vunpack.c.l.b16 %v315
      %v444 = vunpack.c.l.b16 %v316
      %v445 = vunpack.c.l.b16 %v317
      %v446 = vunpack.c.l.b16 %v318
      %v447 = vunpack.c.l.b16 %v319
      %v448 = vpack.c.b16 %v433, %v432
      %v449 = vpack.c.b16 %v435, %v434
      %v450 = vpack.c.b16 %v437, %v436
      %v451 = vpack.c.b16 %v439, %v438
      %v452 = vpack.c.b16 %v441, %v440
      %v453 = vpack.c.b16 %v443, %v442
      %v454 = vpack.c.b16 %v445, %v444
      %v455 = vpack.c.b16 %v447, %v446
      %464 = vmatprep.subr.bf16.mxu0 0
      %465 = vmatpush1.bf16.msra.mxu0 %v455
      %466 = vmatprep.subr.bf16.mxu0 0
      %467 = vmatpush1.bf16.msra.mxu0 %v454
      %468 = vmatprep.subr.bf16.mxu0 0
      %469 = vmatpush1.bf16.msra.mxu0 %v453
      %470 = vmatprep.subr.bf16.mxu0 0
      %471 = vmatpush1.bf16.msra.mxu0 %v452
      %472 = vmatprep.subr.bf16.mxu0 0
      %473 = vmatpush1.bf16.msra.mxu0 %v451
      %474 = vmatprep.subr.bf16.mxu0 0
      %475 = vmatpush1.bf16.msra.mxu0 %v450
      %476 = vmatprep.subr.bf16.mxu0 0
      %477 = vmatpush1.bf16.msra.mxu0 %v449
      %478 = vmatprep.subr.bf16.mxu0 0
      %479 = vmatpush1.bf16.msra.mxu0 %v448
      %480 = vmatprep.subr.bf16.mxu0 0
      %481 = vmatpush2.bf16.msra.mxu0 0
      %482 = vmatprep.subr.bf16.mxu0 0
      %483 = vmatpush2.bf16.msra.mxu0 0
      %484 = vmatprep.subr.bf16.mxu0 0
      %485 = vmatpush2.bf16.msra.mxu0 0
      %486 = vmatprep.subr.bf16.mxu0 0
      %487 = vmatpush2.bf16.msra.mxu0 0
      %488 = vmatprep.subr.bf16.mxu0 0
      %489 = vmatpush2.bf16.msra.mxu0 0
      %490 = vmatprep.subr.bf16.mxu0 0
      %491 = vmatpush2.bf16.msra.mxu0 0
      %492 = vmatprep.subr.bf16.mxu0 0
      %493 = vmatpush2.bf16.msra.mxu0 0
      %494 = vmatprep.subr.bf16.mxu0 0
      %495 = vmatpush2.bf16.msra.mxu0 0
      %496 = vmatprep.mubr.bf16.mxu0 0
      %497 = vmatmul.mubr.bf16.gmra.mxu0 %v384
      %v498 = vpop.f32.mrf.mxu0
      %v499 = vadd.f32 0.0, %v498
      %v500 = vpop.f32.mrf.mxu0
      %v501 = vpop.f32.mrf.mxu0
      %v502 = vadd.f32 0.0, %v501
      %v503 = vpop.f32.mrf.mxu0
      %504 = vmatprep.mubr.bf16.mxu0 0
      %505 = vmatmul.mubr.bf16.gmra.mxu0 %v385
      %v506 = vpop.f32.mrf.mxu0
      %v507 = vadd.f32 0.0, %v506
      %v508 = vpop.f32.mrf.mxu0
      %v509 = vpop.f32.mrf.mxu0
      %v510 = vadd.f32 0.0, %v509
      %v511 = vpop.f32.mrf.mxu0
      %512 = vmatprep.mubr.bf16.mxu0 0
      %513 = vmatmul.mubr.bf16.gmra.mxu0 %v386
      %v514 = vpop.f32.mrf.mxu0
      %v515 = vadd.f32 0.0, %v514
      %v516 = vpop.f32.mrf.mxu0
      %v517 = vpop.f32.mrf.mxu0
      %v518 = vadd.f32 0.0, %v517
      %v519 = vpop.f32.mrf.mxu0
      %520 = vmatprep.mubr.bf16.mxu0 0
      %521 = vmatmul.mubr.bf16.gmra.mxu0 %v387
      %v522 = vpop.f32.mrf.mxu0
      %v523 = vadd.f32 0.0, %v522
      %v524 = vpop.f32.mrf.mxu0
      %v525 = vpop.f32.mrf.mxu0
      %v526 = vadd.f32 0.0, %v525
      %v527 = vpop.f32.mrf.mxu0
      %528 = vmatprep.mubr.bf16.mxu0 0
      %529 = vmatmul.mubr.bf16.gmra.mxu0 %v388
      %v530 = vpop.f32.mrf.mxu0
      %v531 = vadd.f32 0.0, %v530
      %v532 = vpop.f32.mrf.mxu0
      %v533 = vpop.f32.mrf.mxu0
      %v534 = vadd.f32 0.0, %v533
      %v535 = vpop.f32.mrf.mxu0
      %536 = vmatprep.mubr.bf16.mxu0 0
      %537 = vmatmul.mubr.bf16.gmra.mxu0 %v389
      %v538 = vpop.f32.mrf.mxu0
      %v539 = vadd.f32 0.0, %v538
      %v540 = vpop.f32.mrf.mxu0
      %v541 = vpop.f32.mrf.mxu0
      %v542 = vadd.f32 0.0, %v541
      %v543 = vpop.f32.mrf.mxu0
      %544 = vmatprep.mubr.bf16.mxu0 0
      %545 = vmatmul.mubr.bf16.gmra.mxu0 %v390
      %v546 = vpop.f32.mrf.mxu0
      %v547 = vadd.f32 0.0, %v546
      %v548 = vpop.f32.mrf.mxu0
      %v549 = vpop.f32.mrf.mxu0
      %v550 = vadd.f32 0.0, %v549
      %v551 = vpop.f32.mrf.mxu0
      %552 = vmatprep.mubr.bf16.mxu0 0
      %553 = vmatmul.mubr.bf16.gmra.mxu0 %v391
      %v554 = vpop.f32.mrf.mxu0
      %v555 = vadd.f32 0.0, %v554
      %v556 = vpop.f32.mrf.mxu0
      %v557 = vpop.f32.mrf.mxu0
      %v558 = vadd.f32 0.0, %v557
      %v559 = vpop.f32.mrf.mxu0
      %560 = vmatprep.mubr.bf16.mxu0 0
      %561 = vmatmul.mubr.bf16.gmra.mxu0 %v392
      %v562 = vpop.f32.mrf.mxu0
      %v563 = vadd.f32 0.0, %v562
      %v564 = vpop.f32.mrf.mxu0
      %v565 = vpop.f32.mrf.mxu0
      %v566 = vadd.f32 0.0, %v565
      %v567 = vpop.f32.mrf.mxu0
      %568 = vmatprep.mubr.bf16.mxu0 0
      %569 = vmatmul.mubr.bf16.gmra.mxu0 %v393
      %v570 = vpop.f32.mrf.mxu0
      %v571 = vadd.f32 0.0, %v570
      %v572 = vpop.f32.mrf.mxu0
      %v573 = vpop.f32.mrf.mxu0
      %v574 = vadd.f32 0.0, %v573
      %v575 = vpop.f32.mrf.mxu0
      %576 = vmatprep.mubr.bf16.mxu0 0
      %577 = vmatmul.mubr.bf16.gmra.mxu0 %v394
      %v578 = vpop.f32.mrf.mxu0
      %v579 = vadd.f32 0.0, %v578
      %v580 = vpop.f32.mrf.mxu0
      %v581 = vpop.f32.mrf.mxu0
      %v582 = vadd.f32 0.0, %v581
      %v583 = vpop.f32.mrf.mxu0
      %584 = vmatprep.mubr.bf16.mxu0 0
      %585 = vmatmul.mubr.bf16.gmra.mxu0 %v395
      %v586 = vpop.f32.mrf.mxu0
      %v587 = vadd.f32 0.0, %v586
      %v588 = vpop.f32.mrf.mxu0
      %v589 = vpop.f32.mrf.mxu0
      %v590 = vadd.f32 0.0, %v589
      %v591 = vpop.f32.mrf.mxu0
      %592 = vmatprep.mubr.bf16.mxu0 0
      %593 = vmatmul.mubr.bf16.gmra.mxu0 %v396
      %v594 = vpop.f32.mrf.mxu0
      %v595 = vadd.f32 0.0, %v594
      %v596 = vpop.f32.mrf.mxu0
      %v597 = vpop.f32.mrf.mxu0
      %v598 = vadd.f32 0.0, %v597
      %v599 = vpop.f32.mrf.mxu0
      %600 = vmatprep.mubr.bf16.mxu0 0
      %601 = vmatmul.mubr.bf16.gmra.mxu0 %v397
      %v602 = vpop.f32.mrf.mxu0
      %v603 = vadd.f32 0.0, %v602
      %v604 = vpop.f32.mrf.mxu0
      %v605 = vpop.f32.mrf.mxu0
      %v606 = vadd.f32 0.0, %v605
      %v607 = vpop.f32.mrf.mxu0
      %608 = vmatprep.mubr.bf16.mxu0 0
      %609 = vmatmul.mubr.bf16.gmra.mxu0 %v398
      %v610 = vpop.f32.mrf.mxu0
      %v611 = vadd.f32 0.0, %v610
      %v612 = vpop.f32.mrf.mxu0
      %v613 = vpop.f32.mrf.mxu0
      %v614 = vadd.f32 0.0, %v613
      %v615 = vpop.f32.mrf.mxu0
      %616 = vmatprep.mubr.bf16.mxu0 0
      %617 = vmatmul.mubr.bf16.gmra.mxu0 %v399
      %v618 = vpop.f32.mrf.mxu0
      %v619 = vadd.f32 0.0, %v618
      %v620 = vpop.f32.mrf.mxu0
      %v621 = vpop.f32.mrf.mxu0
      %v622 = vadd.f32 0.0, %v621
      %v623 = vpop.f32.mrf.mxu0
      %624 = vdwg.mxu0
      %v625 = vadd.f32 %v499, %v502
      %v626 = vadd.f32 %v625, %v507
      %v627 = vadd.f32 %v626, %v510
      %v628 = vadd.f32 %v627, %v515
      %v629 = vadd.f32 %v628, %v518
      %v630 = vadd.f32 %v629, %v523
      %v631 = vadd.f32 %v630, %v526
      %v632 = vadd.f32 %v631, %v531
      %v633 = vadd.f32 %v632, %v534
      %v634 = vadd.f32 %v633, %v539
      %v635 = vadd.f32 %v634, %v542
      %v636 = vadd.f32 %v635, %v547
      %v637 = vadd.f32 %v636, %v550
      %v638 = vadd.f32 %v637, %v555
      %v639 = vadd.f32 %v638, %v558
      %v640 = vadd.f32 %v639, %v563
      %v641 = vadd.f32 %v640, %v566
      %v642 = vadd.f32 %v641, %v571
      %v643 = vadd.f32 %v642, %v574
      %v644 = vadd.f32 %v643, %v579
      %v645 = vadd.f32 %v644, %v582
      %v646 = vadd.f32 %v645, %v587
      %v647 = vadd.f32 %v646, %v590
      %v648 = vadd.f32 %v647, %v595
      %v649 = vadd.f32 %v648, %v598
      %v650 = vadd.f32 %v649, %v603
      %v651 = vadd.f32 %v650, %v606
      %v652 = vadd.f32 %v651, %v611
      %v653 = vadd.f32 %v652, %v614
      %v654 = vadd.f32 %v653, %v619
      %v655 = vadd.f32 %v654, %v622
      %v656 = vrot.slane %v655, 4
      %v657 = vadd.f32 %v655, %v656
      %v658 = vrot.slane %v657, 2
      %v659 = vadd.f32 %v657, %v658
      %v660 = vrot.slane %v659, 1
      %v661 = vadd.f32 %v659, %v660
      %662 = vst [vmem:[%s264] sm:$0x1] %v661
      %v663 = vmul.f32 %v499, %v499
      %v664 = vmul.f32 %v502, %v502
      %v665 = vmul.f32 %v507, %v507
      %v666 = vmul.f32 %v510, %v510
      %v667 = vmul.f32 %v515, %v515
      %v668 = vmul.f32 %v518, %v518
      %v669 = vmul.f32 %v523, %v523
      %v670 = vmul.f32 %v526, %v526
      %v671 = vmul.f32 %v531, %v531
      %v672 = vmul.f32 %v534, %v534
      %v673 = vmul.f32 %v539, %v539
      %v674 = vmul.f32 %v542, %v542
      %v675 = vmul.f32 %v547, %v547
      %v676 = vmul.f32 %v550, %v550
      %v677 = vmul.f32 %v555, %v555
      %v678 = vmul.f32 %v558, %v558
      %v679 = vmul.f32 %v563, %v563
      %v680 = vmul.f32 %v566, %v566
      %v681 = vmul.f32 %v571, %v571
      %v682 = vmul.f32 %v574, %v574
      %v683 = vmul.f32 %v579, %v579
      %v684 = vmul.f32 %v582, %v582
      %v685 = vmul.f32 %v587, %v587
      %v686 = vmul.f32 %v590, %v590
      %v687 = vmul.f32 %v595, %v595
      %v688 = vmul.f32 %v598, %v598
      %v689 = vmul.f32 %v603, %v603
      %v690 = vmul.f32 %v606, %v606
      %v691 = vmul.f32 %v611, %v611
      %v692 = vmul.f32 %v614, %v614
      %v693 = vmul.f32 %v619, %v619
      %v694 = vmul.f32 %v622, %v622
      %v695 = vadd.f32 %v663, %v664
      %v696 = vadd.f32 %v695, %v665
      %v697 = vadd.f32 %v696, %v666
      %v698 = vadd.f32 %v697, %v667
      %v699 = vadd.f32 %v698, %v668
      %v700 = vadd.f32 %v699, %v669
      %v701 = vadd.f32 %v700, %v670
      %v702 = vadd.f32 %v701, %v671
      %v703 = vadd.f32 %v702, %v672
      %v704 = vadd.f32 %v703, %v673
      %v705 = vadd.f32 %v704, %v674
      %v706 = vadd.f32 %v705, %v675
      %v707 = vadd.f32 %v706, %v676
      %v708 = vadd.f32 %v707, %v677
      %v709 = vadd.f32 %v708, %v678
      %v710 = vadd.f32 %v709, %v679
      %v711 = vadd.f32 %v710, %v680
      %v712 = vadd.f32 %v711, %v681
      %v713 = vadd.f32 %v712, %v682
      %v714 = vadd.f32 %v713, %v683
      %v715 = vadd.f32 %v714, %v684
      %v716 = vadd.f32 %v715, %v685
      %v717 = vadd.f32 %v716, %v686
      %v718 = vadd.f32 %v717, %v687
      %v719 = vadd.f32 %v718, %v688
      %v720 = vadd.f32 %v719, %v689
      %v721 = vadd.f32 %v720, %v690
      %v722 = vadd.f32 %v721, %v691
      %v723 = vadd.f32 %v722, %v692
      %v724 = vadd.f32 %v723, %v693
      %v725 = vadd.f32 %v724, %v694
      %v726 = vrot.slane %v725, 4
      %v727 = vadd.f32 %v725, %v726
      %v728 = vrot.slane %v727, 2
      %v729 = vadd.f32 %v727, %v728
      %v730 = vrot.slane %v729, 1
      %v731 = vadd.f32 %v729, %v730
      %732 = vst [vmem:[%s270] sm:$0x1] %v731
      %v733 = vpack.c.bf16 %v502, %v499
      %v734 = vpack.c.bf16 %v510, %v507
      %v735 = vpack.c.bf16 %v518, %v515
      %v736 = vpack.c.bf16 %v526, %v523
      %v737 = vpack.c.bf16 %v534, %v531
      %v738 = vpack.c.bf16 %v542, %v539
      %v739 = vpack.c.bf16 %v550, %v547
      %v740 = vpack.c.bf16 %v558, %v555
      %v741 = vpack.c.bf16 %v566, %v563
      %v742 = vpack.c.bf16 %v574, %v571
      %v743 = vpack.c.bf16 %v582, %v579
      %v744 = vpack.c.bf16 %v590, %v587
      %v745 = vpack.c.bf16 %v598, %v595
      %v746 = vpack.c.bf16 %v606, %v603
      %v747 = vpack.c.bf16 %v614, %v611
      %v748 = vpack.c.bf16 %v622, %v619
      %v765 = vunpack.c.l.b16 %v733
      %v766 = vunpack.c.h.b16 %v733
      %v767 = vunpack.c.l.b16 %v734
      %v768 = vunpack.c.h.b16 %v734
      %v769 = vunpack.c.l.b16 %v735
      %v770 = vunpack.c.h.b16 %v735
      %v771 = vunpack.c.l.b16 %v736
      %v772 = vunpack.c.h.b16 %v736
      %v773 = vunpack.c.l.b16 %v737
      %v774 = vunpack.c.h.b16 %v737
      %v775 = vunpack.c.l.b16 %v738
      %v776 = vunpack.c.h.b16 %v738
      %v777 = vunpack.c.l.b16 %v739
      %v778 = vunpack.c.h.b16 %v739
      %v779 = vunpack.c.l.b16 %v740
      %v780 = vunpack.c.h.b16 %v740
      %v781 = vunpack.c.l.b16 %v741
      %v782 = vunpack.c.h.b16 %v741
      %v783 = vunpack.c.l.b16 %v742
      %v784 = vunpack.c.h.b16 %v742
      %v785 = vunpack.c.l.b16 %v743
      %v786 = vunpack.c.h.b16 %v743
      %v787 = vunpack.c.l.b16 %v744
      %v788 = vunpack.c.h.b16 %v744
      %v789 = vunpack.c.l.b16 %v745
      %v790 = vunpack.c.h.b16 %v745
      %v791 = vunpack.c.l.b16 %v746
      %v792 = vunpack.c.h.b16 %v746
      %v793 = vunpack.c.l.b16 %v747
      %v794 = vunpack.c.h.b16 %v747
      %v795 = vunpack.c.l.b16 %v748
      %v796 = vunpack.c.h.b16 %v748
      %v797 = vpack.c.b16 %v765, %v765
      %v798 = vpack.c.b16 %v766, %v766
      %v799 = vpack.c.b16 %v767, %v767
      %v800 = vpack.c.b16 %v768, %v768
      %v801 = vpack.c.b16 %v769, %v769
      %v802 = vpack.c.b16 %v770, %v770
      %v803 = vpack.c.b16 %v771, %v771
      %v804 = vpack.c.b16 %v772, %v772
      %v805 = vpack.c.b16 %v773, %v773
      %v806 = vpack.c.b16 %v774, %v774
      %v807 = vpack.c.b16 %v775, %v775
      %v808 = vpack.c.b16 %v776, %v776
      %v809 = vpack.c.b16 %v777, %v777
      %v810 = vpack.c.b16 %v778, %v778
      %v811 = vpack.c.b16 %v779, %v779
      %v812 = vpack.c.b16 %v780, %v780
      %v813 = vpack.c.b16 %v781, %v781
      %v814 = vpack.c.b16 %v782, %v782
      %v815 = vpack.c.b16 %v783, %v783
      %v816 = vpack.c.b16 %v784, %v784
      %v817 = vpack.c.b16 %v785, %v785
      %v818 = vpack.c.b16 %v786, %v786
      %v819 = vpack.c.b16 %v787, %v787
      %v820 = vpack.c.b16 %v788, %v788
      %v821 = vpack.c.b16 %v789, %v789
      %v822 = vpack.c.b16 %v790, %v790
      %v823 = vpack.c.b16 %v791, %v791
      %v824 = vpack.c.b16 %v792, %v792
      %v825 = vpack.c.b16 %v793, %v793
      %v826 = vpack.c.b16 %v794, %v794
      %v827 = vpack.c.b16 %v795, %v795
      %v828 = vpack.c.b16 %v796, %v796
      %861 = vst [vmem:[%s257] sm:$0xf] %v797
      %862 = vst [vmem:[%s257 + $0x4] sm:$0xf] %v798
      %863 = vst [vmem:[%s257 + $0x8] sm:$0xf] %v799
      %864 = vst [vmem:[%s257 + $0xc] sm:$0xf] %v800
      %865 = vst [vmem:[%s257 + $0x10] sm:$0xf] %v801
      %866 = vst [vmem:[%s257 + $0x14] sm:$0xf] %v802
      %867 = vst [vmem:[%s257 + $0x18] sm:$0xf] %v803
      %868 = vst [vmem:[%s257 + $0x1c] sm:$0xf] %v804
      %869 = vst [vmem:[%s257 + $0x20] sm:$0xf] %v805
      %870 = vst [vmem:[%s257 + $0x24] sm:$0xf] %v806
      %871 = vst [vmem:[%s257 + $0x28] sm:$0xf] %v807
      %872 = vst [vmem:[%s257 + $0x2c] sm:$0xf] %v808
      %873 = vst [vmem:[%s257 + $0x30] sm:$0xf] %v809
      %874 = vst [vmem:[%s257 + $0x34] sm:$0xf] %v810
      %875 = vst [vmem:[%s257 + $0x38] sm:$0xf] %v811
      %876 = vst [vmem:[%s257 + $0x3c] sm:$0xf] %v812
      %877 = vst [vmem:[%s257 + $0x40] sm:$0xf] %v813
      %878 = vst [vmem:[%s257 + $0x44] sm:$0xf] %v814
      %879 = vst [vmem:[%s257 + $0x48] sm:$0xf] %v815
      %880 = vst [vmem:[%s257 + $0x4c] sm:$0xf] %v816
      %881 = vst [vmem:[%s257 + $0x50] sm:$0xf] %v817
      %882 = vst [vmem:[%s257 + $0x54] sm:$0xf] %v818
      %883 = vst [vmem:[%s257 + $0x58] sm:$0xf] %v819
      %884 = vst [vmem:[%s257 + $0x5c] sm:$0xf] %v820
      %885 = vst [vmem:[%s257 + $0x60] sm:$0xf] %v821
      %886 = vst [vmem:[%s257 + $0x64] sm:$0xf] %v822
      %887 = vst [vmem:[%s257 + $0x68] sm:$0xf] %v823
      %888 = vst [vmem:[%s257 + $0x6c] sm:$0xf] %v824
      %889 = vst [vmem:[%s257 + $0x70] sm:$0xf] %v825
      %890 = vst [vmem:[%s257 + $0x74] sm:$0xf] %v826
      %891 = vst [vmem:[%s257 + $0x78] sm:$0xf] %v827
      %892 = vst [vmem:[%s257 + $0x7c] sm:$0xf] %v828
      %s893 = smul.u32 32, %s20
      %p894 = scmp.lt.s32.totalorder %s893, 63
      %s895 = scalar_select %p894, %s893, 63
      %p896 = scmp.lt.s32.totalorder %s21, 0
      %s897 = scalar_select %p896, %s21, 0
      %s898 = sadd.s32 %s897, %s895
      %s899 = smul.addr %s898, 4
      %s900 = scalar_lea.vmem %s2, %s899
      %p901 = scmp.lt.s32.totalorder %s20, 1
      %s902 = scalar_select %p901, %s20, 1
      %p903 = scmp.lt.s32.totalorder %s21, 0
      %s904 = scalar_select %p903, %s21, 0
      %s905 = sadd.s32 %s904, %s902
      %s906 = scalar_lea.vmem %s3, %s905
      %p907 = scmp.lt.s32.totalorder %s20, 1
      %s908 = scalar_select %p907, %s20, 1
      %p909 = scmp.lt.s32.totalorder %s21, 0
      %s910 = scalar_select %p909, %s21, 0
      %s911 = sadd.s32 %s910, %s908
      %s912 = scalar_lea.vmem %s4, %s911
      // Predicated region
      $region29: #{conv_bn_relu_forward.2} parent=27 // pred_check
        %p913 = pneg %p100
      $region30: #{conv_bn_relu_forward.2} parent=27 // pred_check_branch
        %915 = sbr.rel (%p913) target = $region32
      $region31: #{conv_bn_relu_forward.2} parent=27 // pred_region
        %s916 = smul.u32 32, %s20
      $region32: #{conv_bn_relu_forward.2} parent=27 // pred_fallthru
        _
      // Predicated region
      $region33: #{conv_bn_relu_forward.2} parent=27 // pred_check
        %p917 = pneg %p128
      $region34: #{conv_bn_relu_forward.2} parent=27 // pred_check_branch
        %919 = sbr.rel (%p917) target = $region36
      $region35: #{conv_bn_relu_forward.2} parent=27 // pred_region
        _
      $region36: #{conv_bn_relu_forward.2} parent=27 // pred_fallthru
        _
      // Predicated region
      $region37: #{conv_bn_relu_forward.2} parent=27 // pred_check
        %p920 = pneg %p156
      $region38: #{conv_bn_relu_forward.2} parent=27 // pred_check_branch
        %922 = sbr.rel (%p920) target = $region40
      $region39: #{conv_bn_relu_forward.2} parent=27 // pred_region
        _
      $region40: #{conv_bn_relu_forward.2} parent=27 // pred_fallthru
        _
    $region28: #{conv_bn_relu_forward.2} parent=5 // pred_fallthru
      _
    %p923 = scmp.le.s32.totalorder 2, %s11
    // Predicated region
    $region41: #{conv_bn_relu_forward.2} parent=5 // pred_check
      %p924 = pneg %p923
    $region42: #{conv_bn_relu_forward.2} parent=5 // pred_check_branch
      %926 = sbr.rel (%p924) target = $region44
    $region43: #{conv_bn_relu_forward.2} parent=5 // pred_region
      %s927 = ssub.s32 %s11, 2
      // Predicated region
      $region45: #{conv_bn_relu_forward.2} parent=43 // pred_check
        %p928 = pneg %p106
      $region46: #{conv_bn_relu_forward.2} parent=43 // pred_check_branch
        %930 = sbr.rel (%p928) target = $region48
      $region47: #{conv_bn_relu_forward.2} parent=43 // pred_region
        %s931 = smul.u32 32, %s22
        %p932 = scmp.lt.s32.totalorder %s931, 63
        %s933 = scalar_select %p932, %s931, 63
        %p934 = scmp.lt.s32.totalorder %s23, 0
        %s935 = scalar_select %p934, %s23, 0
        %s936 = sadd.s32 %s935, %s933
        %s937 = smul.addr %s936, 4
        %s938 = scalar_lea.vmem %s2, %s937
      $region48: #{conv_bn_relu_forward.2} parent=43 // pred_fallthru
        _
      // Predicated region
      $region49: #{conv_bn_relu_forward.2} parent=43 // pred_check
        %p939 = pneg %p134
      $region50: #{conv_bn_relu_forward.2} parent=43 // pred_check_branch
        %941 = sbr.rel (%p939) target = $region52
      $region51: #{conv_bn_relu_forward.2} parent=43 // pred_region
        %p942 = scmp.lt.s32.totalorder %s22, 1
        %s943 = scalar_select %p942, %s22, 1
        %p944 = scmp.lt.s32.totalorder %s23, 0
        %s945 = scalar_select %p944, %s23, 0
        %s946 = sadd.s32 %s945, %s943
        %s947 = scalar_lea.vmem %s3, %s946
      $region52: #{conv_bn_relu_forward.2} parent=43 // pred_fallthru
        _
      // Predicated region
      $region53: #{conv_bn_relu_forward.2} parent=43 // pred_check
        %p948 = pneg %p162
      $region54: #{conv_bn_relu_forward.2} parent=43 // pred_check_branch
        %950 = sbr.rel (%p948) target = $region56
      $region55: #{conv_bn_relu_forward.2} parent=43 // pred_region
        %p951 = scmp.lt.s32.totalorder %s22, 1
        %s952 = scalar_select %p951, %s22, 1
        %p953 = scmp.lt.s32.totalorder %s23, 0
        %s954 = scalar_select %p953, %s23, 0
        %s955 = sadd.s32 %s954, %s952
        %s956 = scalar_lea.vmem %s4, %s955
      $region56: #{conv_bn_relu_forward.2} parent=43 // pred_fallthru
        _
    $region44: #{conv_bn_relu_forward.2} parent=5 // pred_fallthru
      _
  $region6: #{conv_bn_relu_forward.2} parent=0 // loop_footer
    %s15 = sadd.s32 1, %s11
  $region7: #{conv_bn_relu_forward.2} parent=0 // loop_footer_branch
    %10 = sbr.rel target = $region3
  $region8: #{conv_bn_relu_forward.2} parent=0 // loop_exit
    _

</llo_original>
